<compile_context>
chip_gen: v6e
topology: v6e:2x2x1
jax: 0.10.0
libtpu: 0.0.40
codegen_flags: <defaults>
</compile_context>

<pallas_src>
import jax
import jax.numpy as jnp
from jax import lax
from jax.experimental import pallas as pl
from jax.experimental.pallas import tpu as pltpu


# ----------------------------------------------------------------------------
# Fused Pallas kernel: all GRU layers + FC head in one invocation (no grid).
# ----------------------------------------------------------------------------
def fused_gru_fc_kernel(x_ref, *refs):
    """refs = [wih, whh, bx, bhn] * L + [fc_w, fc_b] + [out_ref] + [seq_scratch].

    x_ref : (T*Bp, I)   time-major, flattened, already cast to matmul dtype
    wih   : (in, 3H)    lane-packed input->hidden weights (gate cols r|z|n)
    whh   : (H, 3H)     lane-packed hidden->hidden weights
    bx    : (1, 3H)     b_ih (+ b_hh folded for the r,z gates), f32
    bhn   : (1, H)      b_hh of the n gate (must stay inside r*(...)), f32
    fc_w  : (H, C), fc_b : (1, C)
    out   : (Bp, C)
    seq   : (T*Bp, H)   VMEM scratch holding a layer's full hidden sequence
    """
    num_layers = (len(refs) - 4) // 4
    layer_refs = refs[:4 * num_layers]
    fc_w_ref, fc_b_ref, out_ref, seq_ref = refs[4 * num_layers:]

    Bp = out_ref.shape[0]
    H = seq_ref.shape[1]
    T = seq_ref.shape[0] // Bp

    h = None
    for l in range(num_layers):
        wih_ref, whh_ref, bx_ref, bhn_ref = layer_refs[4 * l: 4 * (l + 1)]
        mm_dt = wih_ref.dtype
        last = (l == num_layers - 1)

        # Layer input: original x for layer 0, previous layer's sequence after.
        xin = x_ref[...] if l == 0 else seq_ref[...]          # (T*Bp, in), mm_dt

        # Hoisted non-recurrent projection: ONE lane-packed matmul covering all
        # timesteps and all three gates, with r/z (+ n's b_ih) biases folded in.
        gx = jnp.dot(xin, wih_ref[...],
                     preferred_element_type=jnp.float32) + bx_ref[...]   # (T*Bp, 3H)

        whh = whh_ref[...]                                    # (H, 3H), mm_dt
        bhn = jnp.broadcast_to(bhn_ref[...], (Bp, H)).astype(jnp.float32)

        h = jnp.zeros((Bp, H), jnp.float32)                   # h0 = 0 (PyTorch default)
        for t in range(T):                                    # static T -> unrolled
            # ONE recurrent matmul per step (the serial critical path).
            gh = jnp.dot(h.astype(mm_dt), whh,
                         preferred_element_type=jnp.float32)  # (Bp, 3H)
            lo = t * Bp
            gxt = gx[lo:lo + Bp]                              # sublane-aligned slice
            r = jax.nn.sigmoid(gxt[:, 0:H] + gh[:, 0:H])
            z = jax.nn.sigmoid(gxt[:, H:2 * H] + gh[:, H:2 * H])
            n = jnp.tanh(gxt[:, 2 * H:3 * H] + r * (gh[:, 2 * H:3 * H] + bhn))
            h = (1.0 - z) * n + z * h
            if not last:                                      # last layer only needs h_T
                seq_ref[pl.ds(lo, Bp), :] = h.astype(seq_ref.dtype)

    # FC head on the last timestep of the last layer.
    out_ref[...] = (
        jnp.dot(h.astype(fc_w_ref.dtype), fc_w_ref[...],
                preferred_element_type=jnp.float32) + fc_b_ref[...]
    ).astype(out_ref.dtype)


# ----------------------------------------------------------------------------
# One-time weight packing (keep this OFF the per-call path).
# ----------------------------------------------------------------------------
def pack_params(params, matmul_dtype=jnp.bfloat16):
    """Repack PyTorch-layout GRU/Linear weights into the kernel layout, once."""
    H = params["gru"][0]["w_hh"].shape[1]
    layers = []
    for layer in params["gru"]:
        w_ih, w_hh = layer["w_ih"], layer["w_hh"]             # (3H, in), (3H, H)
        b_ih, b_hh = layer["b_ih"], layer["b_hh"]             # (3H,), (3H,)
        layers.append({
            "wih": w_ih.T.astype(matmul_dtype),               # (in, 3H) gate cols r|z|n
            "whh": w_hh.T.astype(matmul_dtype),               # (H, 3H)
            # b_hh of r,z folded into the x-projection bias; b_hh_n stays separate
            # because PyTorch applies it inside the r*(...) term.
            "bx": jnp.concatenate([
                b_ih[0:H] + b_hh[0:H],
                b_ih[H:2 * H] + b_hh[H:2 * H],
                b_ih[2 * H:3 * H],
            ]).reshape(1, 3 * H).astype(jnp.float32),
            "bhn": b_hh[2 * H:3 * H].reshape(1, H).astype(jnp.float32),
        })
    return {
        "layers": layers,
        "fc_w": params["fc_w"].T.astype(matmul_dtype),        # (H, C)
        "fc_b": params["fc_b"].reshape(1, -1).astype(jnp.float32),
    }


# ----------------------------------------------------------------------------
# Wrapper: single pallas_call (grid-less; 1 launch for the whole model).
# ----------------------------------------------------------------------------
@jax.jit
def gru_model(x, packed):
    """x: (B, T, input_size) batch_first, like the PyTorch module."""
    B, T, I = x.shape
    layers = packed["layers"]
    H = layers[0]["whh"].shape[0]
    C = packed["fc_w"].shape[1]
    mm_dt = jnp.dtype(layers[0]["wih"].dtype)

    # Pad batch to a full sublane pack for the matmul dtype: 8 (f32) / 16 (bf16).
    sub = 32 // mm_dt.itemsize
    Bp = ((B + sub - 1) // sub) * sub

    x_tm = jnp.transpose(x, (1, 0, 2))                        # (T, B, I) time-major
    if Bp != B:
        x_tm = jnp.pad(x_tm, ((0, 0), (0, Bp - B), (0, 0)))
    x_flat = x_tm.reshape(T * Bp, I).astype(mm_dt)

    inputs = [x_flat]
    in_specs = [pl.BlockSpec((T * Bp, I), lambda: (0, 0))]
    for layer in layers:
        in_sz = layer["wih"].shape[0]
        inputs += [layer["wih"], layer["whh"], layer["bx"], layer["bhn"]]
        in_specs += [
            pl.BlockSpec((in_sz, 3 * H), lambda: (0, 0)),
            pl.BlockSpec((H, 3 * H), lambda: (0, 0)),
            pl.BlockSpec((1, 3 * H), lambda: (0, 0)),
            pl.BlockSpec((1, H), lambda: (0, 0)),
        ]
    inputs += [packed["fc_w"], packed["fc_b"]]
    in_specs += [pl.BlockSpec((H, C), lambda: (0, 0)),
                 pl.BlockSpec((1, C), lambda: (0, 0))]

    # TODO(synk): for production T*Bp*H on v7x (64 MiB VMEM), T-chunk the hoisted
    # projection and add a parallel batch grid axis so both TensorCores are used.
    out = pl.pallas_call(
        fused_gru_fc_kernel,
        out_shape=jax.ShapeDtypeStruct((Bp, C), jnp.float32),
        in_specs=in_specs,
        out_specs=pl.BlockSpec((Bp, C), lambda: (0, 0)),
        scratch_shapes=[pltpu.VMEM((T * Bp, H), mm_dt)],
        compiler_params=pltpu.CompilerParams(vmem_limit_bytes=64 * 1024 * 1024),
    )(*inputs)
    return out[:B]


# ----------------------------------------------------------------------------
# Pure-JAX reference (sanity check)
# ----------------------------------------------------------------------------
def gru_model_ref(x, params):
    B = x.shape[0]
    h_seq = jnp.transpose(x, (1, 0, 2)).astype(jnp.float32)
    for layer in params["gru"]:
        w_ih, w_hh = layer["w_ih"], layer["w_hh"]
        b_ih, b_hh = layer["b_ih"], layer["b_hh"]
        H = w_hh.shape[1]

        def step(h_prev, x_t):
            gx = x_t @ w_ih.T + b_ih
            gh = h_prev @ w_hh.T + b_hh
            r = jax.nn.sigmoid(gx[:, :H] + gh[:, :H])
            z = jax.nn.sigmoid(gx[:, H:2 * H] + gh[:, H:2 * H])
            n = jnp.tanh(gx[:, 2 * H:] + r * gh[:, 2 * H:])
            h_new = (1.0 - z) * n + z * h_prev
            return h_new, h_new

        h0 = jnp.zeros((B, H), jnp.float32)
        _, h_seq = lax.scan(step, h0, h_seq)
    return h_seq[-1] @ params["fc_w"].T + params["fc_b"]


# ----------------------------------------------------------------------------
# Deterministic parameter init (matches nn.GRU / nn.Linear shapes & init dist)
# ----------------------------------------------------------------------------
def init_params(key, input_size, hidden_size, num_layers, num_classes):
    k = 1.0 / jnp.sqrt(hidden_size)
    params = {"gru": []}
    for l in range(num_layers):
        in_sz = input_size if l == 0 else hidden_size
        key, k1, k2, k3, k4 = jax.random.split(key, 5)
        params["gru"].append({
            "w_ih": jax.random.uniform(k1, (3 * hidden_size, in_sz), jnp.float32, -k, k),
            "w_hh": jax.random.uniform(k2, (3 * hidden_size, hidden_size), jnp.float32, -k, k),
            "b_ih": jax.random.uniform(k3, (3 * hidden_size,), jnp.float32, -k, k),
            "b_hh": jax.random.uniform(k4, (3 * hidden_size,), jnp.float32, -k, k),
        })
    key, k5, k6 = jax.random.split(key, 3)
    params["fc_w"] = jax.random.uniform(k5, (num_classes, hidden_size), jnp.float32, -k, k)
    params["fc_b"] = jax.random.uniform(k6, (num_classes,), jnp.float32, -k, k)
    return params


if __name__ == "__main__":
    B, T, INPUT, HIDDEN, LAYERS, CLASSES = 2, 8, 16, 32, 2, 10

    key = jax.random.PRNGKey(0)
    key, xkey = jax.random.split(key)
    x = jax.random.normal(xkey, (B, T, INPUT), jnp.float32)
    params = init_params(key, INPUT, HIDDEN, LAYERS, CLASSES)
    ref = gru_model_ref(x, params)

    # f32 matmul path: tight check against the pure-JAX reference.
    packed_f32 = pack_params(params, matmul_dtype=jnp.float32)
    out_f32 = jax.block_until_ready(gru_model(x, packed_f32))
    assert out_f32.shape == (B, CLASSES)
    assert jnp.allclose(out_f32, ref, atol=1e-4, rtol=1e-4), "f32 mismatch vs reference"

    # bf16 matmul operands (production default): looser tolerance check.
    packed_bf16 = pack_params(params)  # default bfloat16
    out_bf16 = jax.block_until_ready(gru_model(x, packed_bf16))
    assert out_bf16.shape == (B, CLASSES)
    assert jnp.allclose(out_bf16, ref, atol=1e-1, rtol=1e-1), "bf16 mismatch vs reference"

    print("KERNEL_OK")
</pallas_src>

<mosaic_0001>
module attributes {stable_mosaic.version = 11 : i64} {
  func.func @fused_gru_fc_kernel(%arg0: memref<64x16xf32, #tpu.memory_space<vmem>>, %arg1: memref<16x96xf32, #tpu.memory_space<vmem>>, %arg2: memref<32x96xf32, #tpu.memory_space<vmem>>, %arg3: memref<1x96xf32, #tpu.memory_space<vmem>>, %arg4: memref<1x32xf32, #tpu.memory_space<vmem>>, %arg5: memref<32x96xf32, #tpu.memory_space<vmem>>, %arg6: memref<32x96xf32, #tpu.memory_space<vmem>>, %arg7: memref<1x96xf32, #tpu.memory_space<vmem>>, %arg8: memref<1x32xf32, #tpu.memory_space<vmem>>, %arg9: memref<32x10xf32, #tpu.memory_space<vmem>>, %arg10: memref<1x10xf32, #tpu.memory_space<vmem>>, %arg11: memref<8x10xf32, #tpu.memory_space<vmem>>, %arg12: memref<64x32xf32, #tpu.memory_space<vmem>>) attributes {dimension_semantics = [], scalar_prefetch = 0 : i64, scratch_operands = 1 : i64, tpu.core_type = #tpu.core_type<tc>} {
    %c0 = arith.constant 0 : index
    %c0_0 = arith.constant 0 : index
    %0 = vector.load %arg0[%c0, %c0_0] : memref<64x16xf32, #tpu.memory_space<vmem>>, vector<64x16xf32>
    %c0_1 = arith.constant 0 : index
    %c0_2 = arith.constant 0 : index
    %1 = vector.load %arg1[%c0_1, %c0_2] : memref<16x96xf32, #tpu.memory_space<vmem>>, vector<16x96xf32>
    %cst = arith.constant dense<0.000000e+00> : vector<64x96xf32>
    %2 = tpu.matmul %0, %1, %cst {dimension_numbers = #tpu.dot_dimension_numbers<[1], [0], [0], [1], [0, 0, 1, 1], [], []>} : vector<64x16xf32>, vector<16x96xf32>, vector<64x96xf32> -> vector<64x96xf32>
    %c0_3 = arith.constant 0 : index
    %c0_4 = arith.constant 0 : index
    %3 = vector.load %arg3[%c0_3, %c0_4] : memref<1x96xf32, #tpu.memory_space<vmem>>, vector<1x96xf32>
    %4 = vector.broadcast %3 : vector<1x96xf32> to vector<64x96xf32>
    %5 = arith.addf %2, %4 : vector<64x96xf32>
    %c0_5 = arith.constant 0 : index
    %c0_6 = arith.constant 0 : index
    %6 = vector.load %arg2[%c0_5, %c0_6] : memref<32x96xf32, #tpu.memory_space<vmem>>, vector<32x96xf32>
    %c0_7 = arith.constant 0 : index
    %c0_8 = arith.constant 0 : index
    %7 = vector.load %arg4[%c0_7, %c0_8] : memref<1x32xf32, #tpu.memory_space<vmem>>, vector<1x32xf32>
    %8 = vector.shape_cast %7 : vector<1x32xf32> to vector<1x32xf32>
    %9 = vector.broadcast %8 : vector<1x32xf32> to vector<8x32xf32>
    %cst_9 = arith.constant 0.000000e+00 : f32
    %10 = vector.broadcast %cst_9 : f32 to vector<8x32xf32>
    %cst_10 = arith.constant dense<0.000000e+00> : vector<8x96xf32>
    %11 = tpu.matmul %10, %6, %cst_10 {dimension_numbers = #tpu.dot_dimension_numbers<[1], [0], [0], [1], [0, 0, 1, 1], [], []>} : vector<8x32xf32>, vector<32x96xf32>, vector<8x96xf32> -> vector<8x96xf32>
    %12 = vector.extract_strided_slice %5 {offsets = [0, 0], sizes = [8, 96], strides = [1, 1]} : vector<64x96xf32> to vector<8x96xf32>
    %13 = vector.extract_strided_slice %12 {offsets = [0, 0], sizes = [8, 32], strides = [1, 1]} : vector<8x96xf32> to vector<8x32xf32>
    %14 = vector.extract_strided_slice %11 {offsets = [0, 0], sizes = [8, 32], strides = [1, 1]} : vector<8x96xf32> to vector<8x32xf32>
    %15 = arith.addf %13, %14 : vector<8x32xf32>
    %16 = arith.negf %15 : vector<8x32xf32>
    %17 = math.exp %16 : vector<8x32xf32>
    %cst_11 = arith.constant 1.000000e+00 : f32
    %18 = vector.broadcast %cst_11 : f32 to vector<8x32xf32>
    %19 = arith.addf %18, %17 : vector<8x32xf32>
    %20 = arith.divf %18, %19 : vector<8x32xf32>
    %21 = vector.extract_strided_slice %12 {offsets = [0, 32], sizes = [8, 32], strides = [1, 1]} : vector<8x96xf32> to vector<8x32xf32>
    %22 = vector.extract_strided_slice %11 {offsets = [0, 32], sizes = [8, 32], strides = [1, 1]} : vector<8x96xf32> to vector<8x32xf32>
    %23 = arith.addf %21, %22 : vector<8x32xf32>
    %24 = arith.negf %23 : vector<8x32xf32>
    %25 = math.exp %24 : vector<8x32xf32>
    %cst_12 = arith.constant 1.000000e+00 : f32
    %26 = vector.broadcast %cst_12 : f32 to vector<8x32xf32>
    %27 = arith.addf %26, %25 : vector<8x32xf32>
    %28 = arith.divf %26, %27 : vector<8x32xf32>
    %29 = vector.extract_strided_slice %12 {offsets = [0, 64], sizes = [8, 32], strides = [1, 1]} : vector<8x96xf32> to vector<8x32xf32>
    %30 = vector.extract_strided_slice %11 {offsets = [0, 64], sizes = [8, 32], strides = [1, 1]} : vector<8x96xf32> to vector<8x32xf32>
    %31 = arith.addf %30, %9 : vector<8x32xf32>
    %32 = arith.mulf %20, %31 : vector<8x32xf32>
    %33 = arith.addf %29, %32 : vector<8x32xf32>
    %34 = math.tanh %33 : vector<8x32xf32>
    %cst_13 = arith.constant 1.000000e+00 : f32
    %35 = vector.broadcast %cst_13 : f32 to vector<8x32xf32>
    %36 = arith.subf %35, %28 : vector<8x32xf32>
    %37 = arith.mulf %36, %34 : vector<8x32xf32>
    %38 = arith.mulf %28, %10 : vector<8x32xf32>
    %39 = arith.addf %37, %38 : vector<8x32xf32>
    %c0_14 = arith.constant 0 : index
    %c0_15 = arith.constant 0 : index
    %40 = vector.load %arg12[%c0_14, %c0_15] : memref<64x32xf32, #tpu.memory_space<vmem>>, vector<8x32xf32>
    tpu.vector_store %arg12[%c0_14, %c0_15], %39 {strides = array<i32>} : memref<64x32xf32, #tpu.memory_space<vmem>>, vector<8x32xf32>,
    %cst_16 = arith.constant dense<0.000000e+00> : vector<8x96xf32>
    %41 = tpu.matmul %39, %6, %cst_16 {dimension_numbers = #tpu.dot_dimension_numbers<[1], [0], [0], [1], [0, 0, 1, 1], [], []>} : vector<8x32xf32>, vector<32x96xf32>, vector<8x96xf32> -> vector<8x96xf32>
    %42 = vector.extract_strided_slice %5 {offsets = [8, 0], sizes = [8, 96], strides = [1, 1]} : vector<64x96xf32> to vector<8x96xf32>
    %43 = vector.extract_strided_slice %42 {offsets = [0, 0], sizes = [8, 32], strides = [1, 1]} : vector<8x96xf32> to vector<8x32xf32>
    %44 = vector.extract_strided_slice %41 {offsets = [0, 0], sizes = [8, 32], strides = [1, 1]} : vector<8x96xf32> to vector<8x32xf32>
    %45 = arith.addf %43, %44 : vector<8x32xf32>
    %46 = arith.negf %45 : vector<8x32xf32>
    %47 = math.exp %46 : vector<8x32xf32>
    %cst_17 = arith.constant 1.000000e+00 : f32
    %48 = vector.broadcast %cst_17 : f32 to vector<8x32xf32>
    %49 = arith.addf %48, %47 : vector<8x32xf32>
    %50 = arith.divf %48, %49 : vector<8x32xf32>
    %51 = vector.extract_strided_slice %42 {offsets = [0, 32], sizes = [8, 32], strides = [1, 1]} : vector<8x96xf32> to vector<8x32xf32>
    %52 = vector.extract_strided_slice %41 {offsets = [0, 32], sizes = [8, 32], strides = [1, 1]} : vector<8x96xf32> to vector<8x32xf32>
    %53 = arith.addf %51, %52 : vector<8x32xf32>
    %54 = arith.negf %53 : vector<8x32xf32>
    %55 = math.exp %54 : vector<8x32xf32>
    %cst_18 = arith.constant 1.000000e+00 : f32
    %56 = vector.broadcast %cst_18 : f32 to vector<8x32xf32>
    %57 = arith.addf %56, %55 : vector<8x32xf32>
    %58 = arith.divf %56, %57 : vector<8x32xf32>
    %59 = vector.extract_strided_slice %42 {offsets = [0, 64], sizes = [8, 32], strides = [1, 1]} : vector<8x96xf32> to vector<8x32xf32>
    %60 = vector.extract_strided_slice %41 {offsets = [0, 64], sizes = [8, 32], strides = [1, 1]} : vector<8x96xf32> to vector<8x32xf32>
    %61 = arith.addf %60, %9 : vector<8x32xf32>
    %62 = arith.mulf %50, %61 : vector<8x32xf32>
    %63 = arith.addf %59, %62 : vector<8x32xf32>
    %64 = math.tanh %63 : vector<8x32xf32>
    %cst_19 = arith.constant 1.000000e+00 : f32
    %65 = vector.broadcast %cst_19 : f32 to vector<8x32xf32>
    %66 = arith.subf %65, %58 : vector<8x32xf32>
    %67 = arith.mulf %66, %64 : vector<8x32xf32>
    %68 = arith.mulf %58, %39 : vector<8x32xf32>
    %69 = arith.addf %67, %68 : vector<8x32xf32>
    %c8 = arith.constant 8 : index
    %c0_20 = arith.constant 0 : index
    %70 = vector.load %arg12[%c8, %c0_20] : memref<64x32xf32, #tpu.memory_space<vmem>>, vector<8x32xf32>
    tpu.vector_store %arg12[%c8, %c0_20], %69 {strides = array<i32>} : memref<64x32xf32, #tpu.memory_space<vmem>>, vector<8x32xf32>,
    %cst_21 = arith.constant dense<0.000000e+00> : vector<8x96xf32>
    %71 = tpu.matmul %69, %6, %cst_21 {dimension_numbers = #tpu.dot_dimension_numbers<[1], [0], [0], [1], [0, 0, 1, 1], [], []>} : vector<8x32xf32>, vector<32x96xf32>, vector<8x96xf32> -> vector<8x96xf32>
    %72 = vector.extract_strided_slice %5 {offsets = [16, 0], sizes = [8, 96], strides = [1, 1]} : vector<64x96xf32> to vector<8x96xf32>
    %73 = vector.extract_strided_slice %72 {offsets = [0, 0], sizes = [8, 32], strides = [1, 1]} : vector<8x96xf32> to vector<8x32xf32>
    %74 = vector.extract_strided_slice %71 {offsets = [0, 0], sizes = [8, 32], strides = [1, 1]} : vector<8x96xf32> to vector<8x32xf32>
    %75 = arith.addf %73, %74 : vector<8x32xf32>
    %76 = arith.negf %75 : vector<8x32xf32>
    %77 = math.exp %76 : vector<8x32xf32>
    %cst_22 = arith.constant 1.000000e+00 : f32
    %78 = vector.broadcast %cst_22 : f32 to vector<8x32xf32>
    %79 = arith.addf %78, %77 : vector<8x32xf32>
    %80 = arith.divf %78, %79 : vector<8x32xf32>
    %81 = vector.extract_strided_slice %72 {offsets = [0, 32], sizes = [8, 32], strides = [1, 1]} : vector<8x96xf32> to vector<8x32xf32>
    %82 = vector.extract_strided_slice %71 {offsets = [0, 32], sizes = [8, 32], strides = [1, 1]} : vector<8x96xf32> to vector<8x32xf32>
    %83 = arith.addf %81, %82 : vector<8x32xf32>
    %84 = arith.negf %83 : vector<8x32xf32>
    %85 = math.exp %84 : vector<8x32xf32>
    %cst_23 = arith.constant 1.000000e+00 : f32
    %86 = vector.broadcast %cst_23 : f32 to vector<8x32xf32>
    %87 = arith.addf %86, %85 : vector<8x32xf32>
    %88 = arith.divf %86, %87 : vector<8x32xf32>
    %89 = vector.extract_strided_slice %72 {offsets = [0, 64], sizes = [8, 32], strides = [1, 1]} : vector<8x96xf32> to vector<8x32xf32>
    %90 = vector.extract_strided_slice %71 {offsets = [0, 64], sizes = [8, 32], strides = [1, 1]} : vector<8x96xf32> to vector<8x32xf32>
    %91 = arith.addf %90, %9 : vector<8x32xf32>
    %92 = arith.mulf %80, %91 : vector<8x32xf32>
    %93 = arith.addf %89, %92 : vector<8x32xf32>
    %94 = math.tanh %93 : vector<8x32xf32>
    %cst_24 = arith.constant 1.000000e+00 : f32
    %95 = vector.broadcast %cst_24 : f32 to vector<8x32xf32>
    %96 = arith.subf %95, %88 : vector<8x32xf32>
    %97 = arith.mulf %96, %94 : vector<8x32xf32>
    %98 = arith.mulf %88, %69 : vector<8x32xf32>
    %99 = arith.addf %97, %98 : vector<8x32xf32>
    %c16 = arith.constant 16 : index
    %c0_25 = arith.constant 0 : index
    %100 = vector.load %arg12[%c16, %c0_25] : memref<64x32xf32, #tpu.memory_space<vmem>>, vector<8x32xf32>
    tpu.vector_store %arg12[%c16, %c0_25], %99 {strides = array<i32>} : memref<64x32xf32, #tpu.memory_space<vmem>>, vector<8x32xf32>,
    %cst_26 = arith.constant dense<0.000000e+00> : vector<8x96xf32>
    %101 = tpu.matmul %99, %6, %cst_26 {dimension_numbers = #tpu.dot_dimension_numbers<[1], [0], [0], [1], [0, 0, 1, 1], [], []>} : vector<8x32xf32>, vector<32x96xf32>, vector<8x96xf32> -> vector<8x96xf32>
    %102 = vector.extract_strided_slice %5 {offsets = [24, 0], sizes = [8, 96], strides = [1, 1]} : vector<64x96xf32> to vector<8x96xf32>
    %103 = vector.extract_strided_slice %102 {offsets = [0, 0], sizes = [8, 32], strides = [1, 1]} : vector<8x96xf32> to vector<8x32xf32>
    %104 = vector.extract_strided_slice %101 {offsets = [0, 0], sizes = [8, 32], strides = [1, 1]} : vector<8x96xf32> to vector<8x32xf32>
    %105 = arith.addf %103, %104 : vector<8x32xf32>
    %106 = arith.negf %105 : vector<8x32xf32>
    %107 = math.exp %106 : vector<8x32xf32>
    %cst_27 = arith.constant 1.000000e+00 : f32
    %108 = vector.broadcast %cst_27 : f32 to vector<8x32xf32>
    %109 = arith.addf %108, %107 : vector<8x32xf32>
    %110 = arith.divf %108, %109 : vector<8x32xf32>
    %111 = vector.extract_strided_slice %102 {offsets = [0, 32], sizes = [8, 32], strides = [1, 1]} : vector<8x96xf32> to vector<8x32xf32>
    %112 = vector.extract_strided_slice %101 {offsets = [0, 32], sizes = [8, 32], strides = [1, 1]} : vector<8x96xf32> to vector<8x32xf32>
    %113 = arith.addf %111, %112 : vector<8x32xf32>
    %114 = arith.negf %113 : vector<8x32xf32>
    %115 = math.exp %114 : vector<8x32xf32>
    %cst_28 = arith.constant 1.000000e+00 : f32
    %116 = vector.broadcast %cst_28 : f32 to vector<8x32xf32>
    %117 = arith.addf %116, %115 : vector<8x32xf32>
    %118 = arith.divf %116, %117 : vector<8x32xf32>
    %119 = vector.extract_strided_slice %102 {offsets = [0, 64], sizes = [8, 32], strides = [1, 1]} : vector<8x96xf32> to vector<8x32xf32>
    %120 = vector.extract_strided_slice %101 {offsets = [0, 64], sizes = [8, 32], strides = [1, 1]} : vector<8x96xf32> to vector<8x32xf32>
    %121 = arith.addf %120, %9 : vector<8x32xf32>
    %122 = arith.mulf %110, %121 : vector<8x32xf32>
    %123 = arith.addf %119, %122 : vector<8x32xf32>
    %124 = math.tanh %123 : vector<8x32xf32>
    %cst_29 = arith.constant 1.000000e+00 : f32
    %125 = vector.broadcast %cst_29 : f32 to vector<8x32xf32>
    %126 = arith.subf %125, %118 : vector<8x32xf32>
    %127 = arith.mulf %126, %124 : vector<8x32xf32>
    %128 = arith.mulf %118, %99 : vector<8x32xf32>
    %129 = arith.addf %127, %128 : vector<8x32xf32>
    %c24 = arith.constant 24 : index
    %c0_30 = arith.constant 0 : index
    %130 = vector.load %arg12[%c24, %c0_30] : memref<64x32xf32, #tpu.memory_space<vmem>>, vector<8x32xf32>
    tpu.vector_store %arg12[%c24, %c0_30], %129 {strides = array<i32>} : memref<64x32xf32, #tpu.memory_space<vmem>>, vector<8x32xf32>,
    %cst_31 = arith.constant dense<0.000000e+00> : vector<8x96xf32>
    %131 = tpu.matmul %129, %6, %cst_31 {dimension_numbers = #tpu.dot_dimension_numbers<[1], [0], [0], [1], [0, 0, 1, 1], [], []>} : vector<8x32xf32>, vector<32x96xf32>, vector<8x96xf32> -> vector<8x96xf32>
    %132 = vector.extract_strided_slice %5 {offsets = [32, 0], sizes = [8, 96], strides = [1, 1]} : vector<64x96xf32> to vector<8x96xf32>
    %133 = vector.extract_strided_slice %132 {offsets = [0, 0], sizes = [8, 32], strides = [1, 1]} : vector<8x96xf32> to vector<8x32xf32>
    %134 = vector.extract_strided_slice %131 {offsets = [0, 0], sizes = [8, 32], strides = [1, 1]} : vector<8x96xf32> to vector<8x32xf32>
    %135 = arith.addf %133, %134 : vector<8x32xf32>
    %136 = arith.negf %135 : vector<8x32xf32>
    %137 = math.exp %136 : vector<8x32xf32>
    %cst_32 = arith.constant 1.000000e+00 : f32
    %138 = vector.broadcast %cst_32 : f32 to vector<8x32xf32>
    %139 = arith.addf %138, %137 : vector<8x32xf32>
    %140 = arith.divf %138, %139 : vector<8x32xf32>
    %141 = vector.extract_strided_slice %132 {offsets = [0, 32], sizes = [8, 32], strides = [1, 1]} : vector<8x96xf32> to vector<8x32xf32>
    %142 = vector.extract_strided_slice %131 {offsets = [0, 32], sizes = [8, 32], strides = [1, 1]} : vector<8x96xf32> to vector<8x32xf32>
    %143 = arith.addf %141, %142 : vector<8x32xf32>
    %144 = arith.negf %143 : vector<8x32xf32>
    %145 = math.exp %144 : vector<8x32xf32>
    %cst_33 = arith.constant 1.000000e+00 : f32
    %146 = vector.broadcast %cst_33 : f32 to vector<8x32xf32>
    %147 = arith.addf %146, %145 : vector<8x32xf32>
    %148 = arith.divf %146, %147 : vector<8x32xf32>
    %149 = vector.extract_strided_slice %132 {offsets = [0, 64], sizes = [8, 32], strides = [1, 1]} : vector<8x96xf32> to vector<8x32xf32>
    %150 = vector.extract_strided_slice %131 {offsets = [0, 64], sizes = [8, 32], strides = [1, 1]} : vector<8x96xf32> to vector<8x32xf32>
    %151 = arith.addf %150, %9 : vector<8x32xf32>
    %152 = arith.mulf %140, %151 : vector<8x32xf32>
    %153 = arith.addf %149, %152 : vector<8x32xf32>
    %154 = math.tanh %153 : vector<8x32xf32>
    %cst_34 = arith.constant 1.000000e+00 : f32
    %155 = vector.broadcast %cst_34 : f32 to vector<8x32xf32>
    %156 = arith.subf %155, %148 : vector<8x32xf32>
    %157 = arith.mulf %156, %154 : vector<8x32xf32>
    %158 = arith.mulf %148, %129 : vector<8x32xf32>
    %159 = arith.addf %157, %158 : vector<8x32xf32>
    %c32 = arith.constant 32 : index
    %c0_35 = arith.constant 0 : index
    %160 = vector.load %arg12[%c32, %c0_35] : memref<64x32xf32, #tpu.memory_space<vmem>>, vector<8x32xf32>
    tpu.vector_store %arg12[%c32, %c0_35], %159 {strides = array<i32>} : memref<64x32xf32, #tpu.memory_space<vmem>>, vector<8x32xf32>,
    %cst_36 = arith.constant dense<0.000000e+00> : vector<8x96xf32>
    %161 = tpu.matmul %159, %6, %cst_36 {dimension_numbers = #tpu.dot_dimension_numbers<[1], [0], [0], [1], [0, 0, 1, 1], [], []>} : vector<8x32xf32>, vector<32x96xf32>, vector<8x96xf32> -> vector<8x96xf32>
    %162 = vector.extract_strided_slice %5 {offsets = [40, 0], sizes = [8, 96], strides = [1, 1]} : vector<64x96xf32> to vector<8x96xf32>
    %163 = vector.extract_strided_slice %162 {offsets = [0, 0], sizes = [8, 32], strides = [1, 1]} : vector<8x96xf32> to vector<8x32xf32>
    %164 = vector.extract_strided_slice %161 {offsets = [0, 0], sizes = [8, 32], strides = [1, 1]} : vector<8x96xf32> to vector<8x32xf32>
    %165 = arith.addf %163, %164 : vector<8x32xf32>
    %166 = arith.negf %165 : vector<8x32xf32>
    %167 = math.exp %166 : vector<8x32xf32>
    %cst_37 = arith.constant 1.000000e+00 : f32
    %168 = vector.broadcast %cst_37 : f32 to vector<8x32xf32>
    %169 = arith.addf %168, %167 : vector<8x32xf32>
    %170 = arith.divf %168, %169 : vector<8x32xf32>
    %171 = vector.extract_strided_slice %162 {offsets = [0, 32], sizes = [8, 32], strides = [1, 1]} : vector<8x96xf32> to vector<8x32xf32>
    %172 = vector.extract_strided_slice %161 {offsets = [0, 32], sizes = [8, 32], strides = [1, 1]} : vector<8x96xf32> to vector<8x32xf32>
    %173 = arith.addf %171, %172 : vector<8x32xf32>
    %174 = arith.negf %173 : vector<8x32xf32>
    %175 = math.exp %174 : vector<8x32xf32>
    %cst_38 = arith.constant 1.000000e+00 : f32
    %176 = vector.broadcast %cst_38 : f32 to vector<8x32xf32>
    %177 = arith.addf %176, %175 : vector<8x32xf32>
    %178 = arith.divf %176, %177 : vector<8x32xf32>
    %179 = vector.extract_strided_slice %162 {offsets = [0, 64], sizes = [8, 32], strides = [1, 1]} : vector<8x96xf32> to vector<8x32xf32>
    %180 = vector.extract_strided_slice %161 {offsets = [0, 64], sizes = [8, 32], strides = [1, 1]} : vector<8x96xf32> to vector<8x32xf32>
    %181 = arith.addf %180, %9 : vector<8x32xf32>
    %182 = arith.mulf %170, %181 : vector<8x32xf32>
    %183 = arith.addf %179, %182 : vector<8x32xf32>
    %184 = math.tanh %183 : vector<8x32xf32>
    %cst_39 = arith.constant 1.000000e+00 : f32
    %185 = vector.broadcast %cst_39 : f32 to vector<8x32xf32>
    %186 = arith.subf %185, %178 : vector<8x32xf32>
    %187 = arith.mulf %186, %184 : vector<8x32xf32>
    %188 = arith.mulf %178, %159 : vector<8x32xf32>
    %189 = arith.addf %187, %188 : vector<8x32xf32>
    %c40 = arith.constant 40 : index
    %c0_40 = arith.constant 0 : index
    %190 = vector.load %arg12[%c40, %c0_40] : memref<64x32xf32, #tpu.memory_space<vmem>>, vector<8x32xf32>
    tpu.vector_store %arg12[%c40, %c0_40], %189 {strides = array<i32>} : memref<64x32xf32, #tpu.memory_space<vmem>>, vector<8x32xf32>,
    %cst_41 = arith.constant dense<0.000000e+00> : vector<8x96xf32>
    %191 = tpu.matmul %189, %6, %cst_41 {dimension_numbers = #tpu.dot_dimension_numbers<[1], [0], [0], [1], [0, 0, 1, 1], [], []>} : vector<8x32xf32>, vector<32x96xf32>, vector<8x96xf32> -> vector<8x96xf32>
    %192 = vector.extract_strided_slice %5 {offsets = [48, 0], sizes = [8, 96], strides = [1, 1]} : vector<64x96xf32> to vector<8x96xf32>
    %193 = vector.extract_strided_slice %192 {offsets = [0, 0], sizes = [8, 32], strides = [1, 1]} : vector<8x96xf32> to vector<8x32xf32>
    %194 = vector.extract_strided_slice %191 {offsets = [0, 0], sizes = [8, 32], strides = [1, 1]} : vector<8x96xf32> to vector<8x32xf32>
    %195 = arith.addf %193, %194 : vector<8x32xf32>
    %196 = arith.negf %195 : vector<8x32xf32>
    %197 = math.exp %196 : vector<8x32xf32>
    %cst_42 = arith.constant 1.000000e+00 : f32
    %198 = vector.broadcast %cst_42 : f32 to vector<8x32xf32>
    %199 = arith.addf %198, %197 : vector<8x32xf32>
    %200 = arith.divf %198, %199 : vector<8x32xf32>
    %201 = vector.extract_strided_slice %192 {offsets = [0, 32], sizes = [8, 32], strides = [1, 1]} : vector<8x96xf32> to vector<8x32xf32>
    %202 = vector.extract_strided_slice %191 {offsets = [0, 32], sizes = [8, 32], strides = [1, 1]} : vector<8x96xf32> to vector<8x32xf32>
    %203 = arith.addf %201, %202 : vector<8x32xf32>
    %204 = arith.negf %203 : vector<8x32xf32>
    %205 = math.exp %204 : vector<8x32xf32>
    %cst_43 = arith.constant 1.000000e+00 : f32
    %206 = vector.broadcast %cst_43 : f32 to vector<8x32xf32>
    %207 = arith.addf %206, %205 : vector<8x32xf32>
    %208 = arith.divf %206, %207 : vector<8x32xf32>
    %209 = vector.extract_strided_slice %192 {offsets = [0, 64], sizes = [8, 32], strides = [1, 1]} : vector<8x96xf32> to vector<8x32xf32>
    %210 = vector.extract_strided_slice %191 {offsets = [0, 64], sizes = [8, 32], strides = [1, 1]} : vector<8x96xf32> to vector<8x32xf32>
    %211 = arith.addf %210, %9 : vector<8x32xf32>
    %212 = arith.mulf %200, %211 : vector<8x32xf32>
    %213 = arith.addf %209, %212 : vector<8x32xf32>
    %214 = math.tanh %213 : vector<8x32xf32>
    %cst_44 = arith.constant 1.000000e+00 : f32
    %215 = vector.broadcast %cst_44 : f32 to vector<8x32xf32>
    %216 = arith.subf %215, %208 : vector<8x32xf32>
    %217 = arith.mulf %216, %214 : vector<8x32xf32>
    %218 = arith.mulf %208, %189 : vector<8x32xf32>
    %219 = arith.addf %217, %218 : vector<8x32xf32>
    %c48 = arith.constant 48 : index
    %c0_45 = arith.constant 0 : index
    %220 = vector.load %arg12[%c48, %c0_45] : memref<64x32xf32, #tpu.memory_space<vmem>>, vector<8x32xf32>
    tpu.vector_store %arg12[%c48, %c0_45], %219 {strides = array<i32>} : memref<64x32xf32, #tpu.memory_space<vmem>>, vector<8x32xf32>,
    %cst_46 = arith.constant dense<0.000000e+00> : vector<8x96xf32>
    %221 = tpu.matmul %219, %6, %cst_46 {dimension_numbers = #tpu.dot_dimension_numbers<[1], [0], [0], [1], [0, 0, 1, 1], [], []>} : vector<8x32xf32>, vector<32x96xf32>, vector<8x96xf32> -> vector<8x96xf32>
    %222 = vector.extract_strided_slice %5 {offsets = [56, 0], sizes = [8, 96], strides = [1, 1]} : vector<64x96xf32> to vector<8x96xf32>
    %223 = vector.extract_strided_slice %222 {offsets = [0, 0], sizes = [8, 32], strides = [1, 1]} : vector<8x96xf32> to vector<8x32xf32>
    %224 = vector.extract_strided_slice %221 {offsets = [0, 0], sizes = [8, 32], strides = [1, 1]} : vector<8x96xf32> to vector<8x32xf32>
    %225 = arith.addf %223, %224 : vector<8x32xf32>
    %226 = arith.negf %225 : vector<8x32xf32>
    %227 = math.exp %226 : vector<8x32xf32>
    %cst_47 = arith.constant 1.000000e+00 : f32
    %228 = vector.broadcast %cst_47 : f32 to vector<8x32xf32>
    %229 = arith.addf %228, %227 : vector<8x32xf32>
    %230 = arith.divf %228, %229 : vector<8x32xf32>
    %231 = vector.extract_strided_slice %222 {offsets = [0, 32], sizes = [8, 32], strides = [1, 1]} : vector<8x96xf32> to vector<8x32xf32>
    %232 = vector.extract_strided_slice %221 {offsets = [0, 32], sizes = [8, 32], strides = [1, 1]} : vector<8x96xf32> to vector<8x32xf32>
    %233 = arith.addf %231, %232 : vector<8x32xf32>
    %234 = arith.negf %233 : vector<8x32xf32>
    %235 = math.exp %234 : vector<8x32xf32>
    %cst_48 = arith.constant 1.000000e+00 : f32
    %236 = vector.broadcast %cst_48 : f32 to vector<8x32xf32>
    %237 = arith.addf %236, %235 : vector<8x32xf32>
    %238 = arith.divf %236, %237 : vector<8x32xf32>
    %239 = vector.extract_strided_slice %222 {offsets = [0, 64], sizes = [8, 32], strides = [1, 1]} : vector<8x96xf32> to vector<8x32xf32>
    %240 = vector.extract_strided_slice %221 {offsets = [0, 64], sizes = [8, 32], strides = [1, 1]} : vector<8x96xf32> to vector<8x32xf32>
    %241 = arith.addf %240, %9 : vector<8x32xf32>
    %242 = arith.mulf %230, %241 : vector<8x32xf32>
    %243 = arith.addf %239, %242 : vector<8x32xf32>
    %244 = math.tanh %243 : vector<8x32xf32>
    %cst_49 = arith.constant 1.000000e+00 : f32
    %245 = vector.broadcast %cst_49 : f32 to vector<8x32xf32>
    %246 = arith.subf %245, %238 : vector<8x32xf32>
    %247 = arith.mulf %246, %244 : vector<8x32xf32>
    %248 = arith.mulf %238, %219 : vector<8x32xf32>
    %249 = arith.addf %247, %248 : vector<8x32xf32>
    %c56 = arith.constant 56 : index
    %c0_50 = arith.constant 0 : index
    %250 = vector.load %arg12[%c56, %c0_50] : memref<64x32xf32, #tpu.memory_space<vmem>>, vector<8x32xf32>
    tpu.vector_store %arg12[%c56, %c0_50], %249 {strides = array<i32>} : memref<64x32xf32, #tpu.memory_space<vmem>>, vector<8x32xf32>,
    %c0_51 = arith.constant 0 : index
    %c0_52 = arith.constant 0 : index
    %251 = vector.load %arg12[%c0_51, %c0_52] : memref<64x32xf32, #tpu.memory_space<vmem>>, vector<64x32xf32>
    %c0_53 = arith.constant 0 : index
    %c0_54 = arith.constant 0 : index
    %252 = vector.load %arg5[%c0_53, %c0_54] : memref<32x96xf32, #tpu.memory_space<vmem>>, vector<32x96xf32>
    %cst_55 = arith.constant dense<0.000000e+00> : vector<64x96xf32>
    %253 = tpu.matmul %251, %252, %cst_55 {dimension_numbers = #tpu.dot_dimension_numbers<[1], [0], [0], [1], [0, 0, 1, 1], [], []>} : vector<64x32xf32>, vector<32x96xf32>, vector<64x96xf32> -> vector<64x96xf32>
    %c0_56 = arith.constant 0 : index
    %c0_57 = arith.constant 0 : index
    %254 = vector.load %arg7[%c0_56, %c0_57] : memref<1x96xf32, #tpu.memory_space<vmem>>, vector<1x96xf32>
    %255 = vector.broadcast %254 : vector<1x96xf32> to vector<64x96xf32>
    %256 = arith.addf %253, %255 : vector<64x96xf32>
    %c0_58 = arith.constant 0 : index
    %c0_59 = arith.constant 0 : index
    %257 = vector.load %arg6[%c0_58, %c0_59] : memref<32x96xf32, #tpu.memory_space<vmem>>, vector<32x96xf32>
    %c0_60 = arith.constant 0 : index
    %c0_61 = arith.constant 0 : index
    %258 = vector.load %arg8[%c0_60, %c0_61] : memref<1x32xf32, #tpu.memory_space<vmem>>, vector<1x32xf32>
    %259 = vector.shape_cast %258 : vector<1x32xf32> to vector<1x32xf32>
    %260 = vector.broadcast %259 : vector<1x32xf32> to vector<8x32xf32>
    %cst_62 = arith.constant 0.000000e+00 : f32
    %261 = vector.broadcast %cst_62 : f32 to vector<8x32xf32>
    %cst_63 = arith.constant dense<0.000000e+00> : vector<8x96xf32>
    %262 = tpu.matmul %261, %257, %cst_63 {dimension_numbers = #tpu.dot_dimension_numbers<[1], [0], [0], [1], [0, 0, 1, 1], [], []>} : vector<8x32xf32>, vector<32x96xf32>, vector<8x96xf32> -> vector<8x96xf32>
    %263 = vector.extract_strided_slice %256 {offsets = [0, 0], sizes = [8, 96], strides = [1, 1]} : vector<64x96xf32> to vector<8x96xf32>
    %264 = vector.extract_strided_slice %263 {offsets = [0, 0], sizes = [8, 32], strides = [1, 1]} : vector<8x96xf32> to vector<8x32xf32>
    %265 = vector.extract_strided_slice %262 {offsets = [0, 0], sizes = [8, 32], strides = [1, 1]} : vector<8x96xf32> to vector<8x32xf32>
    %266 = arith.addf %264, %265 : vector<8x32xf32>
    %267 = arith.negf %266 : vector<8x32xf32>
    %268 = math.exp %267 : vector<8x32xf32>
    %cst_64 = arith.constant 1.000000e+00 : f32
    %269 = vector.broadcast %cst_64 : f32 to vector<8x32xf32>
    %270 = arith.addf %269, %268 : vector<8x32xf32>
    %271 = arith.divf %269, %270 : vector<8x32xf32>
    %272 = vector.extract_strided_slice %263 {offsets = [0, 32], sizes = [8, 32], strides = [1, 1]} : vector<8x96xf32> to vector<8x32xf32>
    %273 = vector.extract_strided_slice %262 {offsets = [0, 32], sizes = [8, 32], strides = [1, 1]} : vector<8x96xf32> to vector<8x32xf32>
    %274 = arith.addf %272, %273 : vector<8x32xf32>
    %275 = arith.negf %274 : vector<8x32xf32>
    %276 = math.exp %275 : vector<8x32xf32>
    %cst_65 = arith.constant 1.000000e+00 : f32
    %277 = vector.broadcast %cst_65 : f32 to vector<8x32xf32>
    %278 = arith.addf %277, %276 : vector<8x32xf32>
    %279 = arith.divf %277, %278 : vector<8x32xf32>
    %280 = vector.extract_strided_slice %263 {offsets = [0, 64], sizes = [8, 32], strides = [1, 1]} : vector<8x96xf32> to vector<8x32xf32>
    %281 = vector.extract_strided_slice %262 {offsets = [0, 64], sizes = [8, 32], strides = [1, 1]} : vector<8x96xf32> to vector<8x32xf32>
    %282 = arith.addf %281, %260 : vector<8x32xf32>
    %283 = arith.mulf %271, %282 : vector<8x32xf32>
    %284 = arith.addf %280, %283 : vector<8x32xf32>
    %285 = math.tanh %284 : vector<8x32xf32>
    %cst_66 = arith.constant 1.000000e+00 : f32
    %286 = vector.broadcast %cst_66 : f32 to vector<8x32xf32>
    %287 = arith.subf %286, %279 : vector<8x32xf32>
    %288 = arith.mulf %287, %285 : vector<8x32xf32>
    %289 = arith.mulf %279, %261 : vector<8x32xf32>
    %290 = arith.addf %288, %289 : vector<8x32xf32>
    %cst_67 = arith.constant dense<0.000000e+00> : vector<8x96xf32>
    %291 = tpu.matmul %290, %257, %cst_67 {dimension_numbers = #tpu.dot_dimension_numbers<[1], [0], [0], [1], [0, 0, 1, 1], [], []>} : vector<8x32xf32>, vector<32x96xf32>, vector<8x96xf32> -> vector<8x96xf32>
    %292 = vector.extract_strided_slice %256 {offsets = [8, 0], sizes = [8, 96], strides = [1, 1]} : vector<64x96xf32> to vector<8x96xf32>
    %293 = vector.extract_strided_slice %292 {offsets = [0, 0], sizes = [8, 32], strides = [1, 1]} : vector<8x96xf32> to vector<8x32xf32>
    %294 = vector.extract_strided_slice %291 {offsets = [0, 0], sizes = [8, 32], strides = [1, 1]} : vector<8x96xf32> to vector<8x32xf32>
    %295 = arith.addf %293, %294 : vector<8x32xf32>
    %296 = arith.negf %295 : vector<8x32xf32>
    %297 = math.exp %296 : vector<8x32xf32>
    %cst_68 = arith.constant 1.000000e+00 : f32
    %298 = vector.broadcast %cst_68 : f32 to vector<8x32xf32>
    %299 = arith.addf %298, %297 : vector<8x32xf32>
    %300 = arith.divf %298, %299 : vector<8x32xf32>
    %301 = vector.extract_strided_slice %292 {offsets = [0, 32], sizes = [8, 32], strides = [1, 1]} : vector<8x96xf32> to vector<8x32xf32>
    %302 = vector.extract_strided_slice %291 {offsets = [0, 32], sizes = [8, 32], strides = [1, 1]} : vector<8x96xf32> to vector<8x32xf32>
    %303 = arith.addf %301, %302 : vector<8x32xf32>
    %304 = arith.negf %303 : vector<8x32xf32>
    %305 = math.exp %304 : vector<8x32xf32>
    %cst_69 = arith.constant 1.000000e+00 : f32
    %306 = vector.broadcast %cst_69 : f32 to vector<8x32xf32>
    %307 = arith.addf %306, %305 : vector<8x32xf32>
    %308 = arith.divf %306, %307 : vector<8x32xf32>
    %309 = vector.extract_strided_slice %292 {offsets = [0, 64], sizes = [8, 32], strides = [1, 1]} : vector<8x96xf32> to vector<8x32xf32>
    %310 = vector.extract_strided_slice %291 {offsets = [0, 64], sizes = [8, 32], strides = [1, 1]} : vector<8x96xf32> to vector<8x32xf32>
    %311 = arith.addf %310, %260 : vector<8x32xf32>
    %312 = arith.mulf %300, %311 : vector<8x32xf32>
    %313 = arith.addf %309, %312 : vector<8x32xf32>
    %314 = math.tanh %313 : vector<8x32xf32>
    %cst_70 = arith.constant 1.000000e+00 : f32
    %315 = vector.broadcast %cst_70 : f32 to vector<8x32xf32>
    %316 = arith.subf %315, %308 : vector<8x32xf32>
    %317 = arith.mulf %316, %314 : vector<8x32xf32>
    %318 = arith.mulf %308, %290 : vector<8x32xf32>
    %319 = arith.addf %317, %318 : vector<8x32xf32>
    %cst_71 = arith.constant dense<0.000000e+00> : vector<8x96xf32>
    %320 = tpu.matmul %319, %257, %cst_71 {dimension_numbers = #tpu.dot_dimension_numbers<[1], [0], [0], [1], [0, 0, 1, 1], [], []>} : vector<8x32xf32>, vector<32x96xf32>, vector<8x96xf32> -> vector<8x96xf32>
    %321 = vector.extract_strided_slice %256 {offsets = [16, 0], sizes = [8, 96], strides = [1, 1]} : vector<64x96xf32> to vector<8x96xf32>
    %322 = vector.extract_strided_slice %321 {offsets = [0, 0], sizes = [8, 32], strides = [1, 1]} : vector<8x96xf32> to vector<8x32xf32>
    %323 = vector.extract_strided_slice %320 {offsets = [0, 0], sizes = [8, 32], strides = [1, 1]} : vector<8x96xf32> to vector<8x32xf32>
    %324 = arith.addf %322, %323 : vector<8x32xf32>
    %325 = arith.negf %324 : vector<8x32xf32>
    %326 = math.exp %325 : vector<8x32xf32>
    %cst_72 = arith.constant 1.000000e+00 : f32
    %327 = vector.broadcast %cst_72 : f32 to vector<8x32xf32>
    %328 = arith.addf %327, %326 : vector<8x32xf32>
    %329 = arith.divf %327, %328 : vector<8x32xf32>
    %330 = vector.extract_strided_slice %321 {offsets = [0, 32], sizes = [8, 32], strides = [1, 1]} : vector<8x96xf32> to vector<8x32xf32>
    %331 = vector.extract_strided_slice %320 {offsets = [0, 32], sizes = [8, 32], strides = [1, 1]} : vector<8x96xf32> to vector<8x32xf32>
    %332 = arith.addf %330, %331 : vector<8x32xf32>
    %333 = arith.negf %332 : vector<8x32xf32>
    %334 = math.exp %333 : vector<8x32xf32>
    %cst_73 = arith.constant 1.000000e+00 : f32
    %335 = vector.broadcast %cst_73 : f32 to vector<8x32xf32>
    %336 = arith.addf %335, %334 : vector<8x32xf32>
    %337 = arith.divf %335, %336 : vector<8x32xf32>
    %338 = vector.extract_strided_slice %321 {offsets = [0, 64], sizes = [8, 32], strides = [1, 1]} : vector<8x96xf32> to vector<8x32xf32>
    %339 = vector.extract_strided_slice %320 {offsets = [0, 64], sizes = [8, 32], strides = [1, 1]} : vector<8x96xf32> to vector<8x32xf32>
    %340 = arith.addf %339, %260 : vector<8x32xf32>
    %341 = arith.mulf %329, %340 : vector<8x32xf32>
    %342 = arith.addf %338, %341 : vector<8x32xf32>
    %343 = math.tanh %342 : vector<8x32xf32>
    %cst_74 = arith.constant 1.000000e+00 : f32
    %344 = vector.broadcast %cst_74 : f32 to vector<8x32xf32>
    %345 = arith.subf %344, %337 : vector<8x32xf32>
    %346 = arith.mulf %345, %343 : vector<8x32xf32>
    %347 = arith.mulf %337, %319 : vector<8x32xf32>
    %348 = arith.addf %346, %347 : vector<8x32xf32>
    %cst_75 = arith.constant dense<0.000000e+00> : vector<8x96xf32>
    %349 = tpu.matmul %348, %257, %cst_75 {dimension_numbers = #tpu.dot_dimension_numbers<[1], [0], [0], [1], [0, 0, 1, 1], [], []>} : vector<8x32xf32>, vector<32x96xf32>, vector<8x96xf32> -> vector<8x96xf32>
    %350 = vector.extract_strided_slice %256 {offsets = [24, 0], sizes = [8, 96], strides = [1, 1]} : vector<64x96xf32> to vector<8x96xf32>
    %351 = vector.extract_strided_slice %350 {offsets = [0, 0], sizes = [8, 32], strides = [1, 1]} : vector<8x96xf32> to vector<8x32xf32>
    %352 = vector.extract_strided_slice %349 {offsets = [0, 0], sizes = [8, 32], strides = [1, 1]} : vector<8x96xf32> to vector<8x32xf32>
    %353 = arith.addf %351, %352 : vector<8x32xf32>
    %354 = arith.negf %353 : vector<8x32xf32>
    %355 = math.exp %354 : vector<8x32xf32>
    %cst_76 = arith.constant 1.000000e+00 : f32
    %356 = vector.broadcast %cst_76 : f32 to vector<8x32xf32>
    %357 = arith.addf %356, %355 : vector<8x32xf32>
    %358 = arith.divf %356, %357 : vector<8x32xf32>
    %359 = vector.extract_strided_slice %350 {offsets = [0, 32], sizes = [8, 32], strides = [1, 1]} : vector<8x96xf32> to vector<8x32xf32>
    %360 = vector.extract_strided_slice %349 {offsets = [0, 32], sizes = [8, 32], strides = [1, 1]} : vector<8x96xf32> to vector<8x32xf32>
    %361 = arith.addf %359, %360 : vector<8x32xf32>
    %362 = arith.negf %361 : vector<8x32xf32>
    %363 = math.exp %362 : vector<8x32xf32>
    %cst_77 = arith.constant 1.000000e+00 : f32
    %364 = vector.broadcast %cst_77 : f32 to vector<8x32xf32>
    %365 = arith.addf %364, %363 : vector<8x32xf32>
    %366 = arith.divf %364, %365 : vector<8x32xf32>
    %367 = vector.extract_strided_slice %350 {offsets = [0, 64], sizes = [8, 32], strides = [1, 1]} : vector<8x96xf32> to vector<8x32xf32>
    %368 = vector.extract_strided_slice %349 {offsets = [0, 64], sizes = [8, 32], strides = [1, 1]} : vector<8x96xf32> to vector<8x32xf32>
    %369 = arith.addf %368, %260 : vector<8x32xf32>
    %370 = arith.mulf %358, %369 : vector<8x32xf32>
    %371 = arith.addf %367, %370 : vector<8x32xf32>
    %372 = math.tanh %371 : vector<8x32xf32>
    %cst_78 = arith.constant 1.000000e+00 : f32
    %373 = vector.broadcast %cst_78 : f32 to vector<8x32xf32>
    %374 = arith.subf %373, %366 : vector<8x32xf32>
    %375 = arith.mulf %374, %372 : vector<8x32xf32>
    %376 = arith.mulf %366, %348 : vector<8x32xf32>
    %377 = arith.addf %375, %376 : vector<8x32xf32>
    %cst_79 = arith.constant dense<0.000000e+00> : vector<8x96xf32>
    %378 = tpu.matmul %377, %257, %cst_79 {dimension_numbers = #tpu.dot_dimension_numbers<[1], [0], [0], [1], [0, 0, 1, 1], [], []>} : vector<8x32xf32>, vector<32x96xf32>, vector<8x96xf32> -> vector<8x96xf32>
    %379 = vector.extract_strided_slice %256 {offsets = [32, 0], sizes = [8, 96], strides = [1, 1]} : vector<64x96xf32> to vector<8x96xf32>
    %380 = vector.extract_strided_slice %379 {offsets = [0, 0], sizes = [8, 32], strides = [1, 1]} : vector<8x96xf32> to vector<8x32xf32>
    %381 = vector.extract_strided_slice %378 {offsets = [0, 0], sizes = [8, 32], strides = [1, 1]} : vector<8x96xf32> to vector<8x32xf32>
    %382 = arith.addf %380, %381 : vector<8x32xf32>
    %383 = arith.negf %382 : vector<8x32xf32>
    %384 = math.exp %383 : vector<8x32xf32>
    %cst_80 = arith.constant 1.000000e+00 : f32
    %385 = vector.broadcast %cst_80 : f32 to vector<8x32xf32>
    %386 = arith.addf %385, %384 : vector<8x32xf32>
    %387 = arith.divf %385, %386 : vector<8x32xf32>
    %388 = vector.extract_strided_slice %379 {offsets = [0, 32], sizes = [8, 32], strides = [1, 1]} : vector<8x96xf32> to vector<8x32xf32>
    %389 = vector.extract_strided_slice %378 {offsets = [0, 32], sizes = [8, 32], strides = [1, 1]} : vector<8x96xf32> to vector<8x32xf32>
    %390 = arith.addf %388, %389 : vector<8x32xf32>
    %391 = arith.negf %390 : vector<8x32xf32>
    %392 = math.exp %391 : vector<8x32xf32>
    %cst_81 = arith.constant 1.000000e+00 : f32
    %393 = vector.broadcast %cst_81 : f32 to vector<8x32xf32>
    %394 = arith.addf %393, %392 : vector<8x32xf32>
    %395 = arith.divf %393, %394 : vector<8x32xf32>
    %396 = vector.extract_strided_slice %379 {offsets = [0, 64], sizes = [8, 32], strides = [1, 1]} : vector<8x96xf32> to vector<8x32xf32>
    %397 = vector.extract_strided_slice %378 {offsets = [0, 64], sizes = [8, 32], strides = [1, 1]} : vector<8x96xf32> to vector<8x32xf32>
    %398 = arith.addf %397, %260 : vector<8x32xf32>
    %399 = arith.mulf %387, %398 : vector<8x32xf32>
    %400 = arith.addf %396, %399 : vector<8x32xf32>
    %401 = math.tanh %400 : vector<8x32xf32>
    %cst_82 = arith.constant 1.000000e+00 : f32
    %402 = vector.broadcast %cst_82 : f32 to vector<8x32xf32>
    %403 = arith.subf %402, %395 : vector<8x32xf32>
    %404 = arith.mulf %403, %401 : vector<8x32xf32>
    %405 = arith.mulf %395, %377 : vector<8x32xf32>
    %406 = arith.addf %404, %405 : vector<8x32xf32>
    %cst_83 = arith.constant dense<0.000000e+00> : vector<8x96xf32>
    %407 = tpu.matmul %406, %257, %cst_83 {dimension_numbers = #tpu.dot_dimension_numbers<[1], [0], [0], [1], [0, 0, 1, 1], [], []>} : vector<8x32xf32>, vector<32x96xf32>, vector<8x96xf32> -> vector<8x96xf32>
    %408 = vector.extract_strided_slice %256 {offsets = [40, 0], sizes = [8, 96], strides = [1, 1]} : vector<64x96xf32> to vector<8x96xf32>
    %409 = vector.extract_strided_slice %408 {offsets = [0, 0], sizes = [8, 32], strides = [1, 1]} : vector<8x96xf32> to vector<8x32xf32>
    %410 = vector.extract_strided_slice %407 {offsets = [0, 0], sizes = [8, 32], strides = [1, 1]} : vector<8x96xf32> to vector<8x32xf32>
    %411 = arith.addf %409, %410 : vector<8x32xf32>
    %412 = arith.negf %411 : vector<8x32xf32>
    %413 = math.exp %412 : vector<8x32xf32>
    %cst_84 = arith.constant 1.000000e+00 : f32
    %414 = vector.broadcast %cst_84 : f32 to vector<8x32xf32>
    %415 = arith.addf %414, %413 : vector<8x32xf32>
    %416 = arith.divf %414, %415 : vector<8x32xf32>
    %417 = vector.extract_strided_slice %408 {offsets = [0, 32], sizes = [8, 32], strides = [1, 1]} : vector<8x96xf32> to vector<8x32xf32>
    %418 = vector.extract_strided_slice %407 {offsets = [0, 32], sizes = [8, 32], strides = [1, 1]} : vector<8x96xf32> to vector<8x32xf32>
    %419 = arith.addf %417, %418 : vector<8x32xf32>
    %420 = arith.negf %419 : vector<8x32xf32>
    %421 = math.exp %420 : vector<8x32xf32>
    %cst_85 = arith.constant 1.000000e+00 : f32
    %422 = vector.broadcast %cst_85 : f32 to vector<8x32xf32>
    %423 = arith.addf %422, %421 : vector<8x32xf32>
    %424 = arith.divf %422, %423 : vector<8x32xf32>
    %425 = vector.extract_strided_slice %408 {offsets = [0, 64], sizes = [8, 32], strides = [1, 1]} : vector<8x96xf32> to vector<8x32xf32>
    %426 = vector.extract_strided_slice %407 {offsets = [0, 64], sizes = [8, 32], strides = [1, 1]} : vector<8x96xf32> to vector<8x32xf32>
    %427 = arith.addf %426, %260 : vector<8x32xf32>
    %428 = arith.mulf %416, %427 : vector<8x32xf32>
    %429 = arith.addf %425, %428 : vector<8x32xf32>
    %430 = math.tanh %429 : vector<8x32xf32>
    %cst_86 = arith.constant 1.000000e+00 : f32
    %431 = vector.broadcast %cst_86 : f32 to vector<8x32xf32>
    %432 = arith.subf %431, %424 : vector<8x32xf32>
    %433 = arith.mulf %432, %430 : vector<8x32xf32>
    %434 = arith.mulf %424, %406 : vector<8x32xf32>
    %435 = arith.addf %433, %434 : vector<8x32xf32>
    %cst_87 = arith.constant dense<0.000000e+00> : vector<8x96xf32>
    %436 = tpu.matmul %435, %257, %cst_87 {dimension_numbers = #tpu.dot_dimension_numbers<[1], [0], [0], [1], [0, 0, 1, 1], [], []>} : vector<8x32xf32>, vector<32x96xf32>, vector<8x96xf32> -> vector<8x96xf32>
    %437 = vector.extract_strided_slice %256 {offsets = [48, 0], sizes = [8, 96], strides = [1, 1]} : vector<64x96xf32> to vector<8x96xf32>
    %438 = vector.extract_strided_slice %437 {offsets = [0, 0], sizes = [8, 32], strides = [1, 1]} : vector<8x96xf32> to vector<8x32xf32>
    %439 = vector.extract_strided_slice %436 {offsets = [0, 0], sizes = [8, 32], strides = [1, 1]} : vector<8x96xf32> to vector<8x32xf32>
    %440 = arith.addf %438, %439 : vector<8x32xf32>
    %441 = arith.negf %440 : vector<8x32xf32>
    %442 = math.exp %441 : vector<8x32xf32>
    %cst_88 = arith.constant 1.000000e+00 : f32
    %443 = vector.broadcast %cst_88 : f32 to vector<8x32xf32>
    %444 = arith.addf %443, %442 : vector<8x32xf32>
    %445 = arith.divf %443, %444 : vector<8x32xf32>
    %446 = vector.extract_strided_slice %437 {offsets = [0, 32], sizes = [8, 32], strides = [1, 1]} : vector<8x96xf32> to vector<8x32xf32>
    %447 = vector.extract_strided_slice %436 {offsets = [0, 32], sizes = [8, 32], strides = [1, 1]} : vector<8x96xf32> to vector<8x32xf32>
    %448 = arith.addf %446, %447 : vector<8x32xf32>
    %449 = arith.negf %448 : vector<8x32xf32>
    %450 = math.exp %449 : vector<8x32xf32>
    %cst_89 = arith.constant 1.000000e+00 : f32
    %451 = vector.broadcast %cst_89 : f32 to vector<8x32xf32>
    %452 = arith.addf %451, %450 : vector<8x32xf32>
    %453 = arith.divf %451, %452 : vector<8x32xf32>
    %454 = vector.extract_strided_slice %437 {offsets = [0, 64], sizes = [8, 32], strides = [1, 1]} : vector<8x96xf32> to vector<8x32xf32>
    %455 = vector.extract_strided_slice %436 {offsets = [0, 64], sizes = [8, 32], strides = [1, 1]} : vector<8x96xf32> to vector<8x32xf32>
    %456 = arith.addf %455, %260 : vector<8x32xf32>
    %457 = arith.mulf %445, %456 : vector<8x32xf32>
    %458 = arith.addf %454, %457 : vector<8x32xf32>
    %459 = math.tanh %458 : vector<8x32xf32>
    %cst_90 = arith.constant 1.000000e+00 : f32
    %460 = vector.broadcast %cst_90 : f32 to vector<8x32xf32>
    %461 = arith.subf %460, %453 : vector<8x32xf32>
    %462 = arith.mulf %461, %459 : vector<8x32xf32>
    %463 = arith.mulf %453, %435 : vector<8x32xf32>
    %464 = arith.addf %462, %463 : vector<8x32xf32>
    %cst_91 = arith.constant dense<0.000000e+00> : vector<8x96xf32>
    %465 = tpu.matmul %464, %257, %cst_91 {dimension_numbers = #tpu.dot_dimension_numbers<[1], [0], [0], [1], [0, 0, 1, 1], [], []>} : vector<8x32xf32>, vector<32x96xf32>, vector<8x96xf32> -> vector<8x96xf32>
    %466 = vector.extract_strided_slice %256 {offsets = [56, 0], sizes = [8, 96], strides = [1, 1]} : vector<64x96xf32> to vector<8x96xf32>
    %467 = vector.extract_strided_slice %466 {offsets = [0, 0], sizes = [8, 32], strides = [1, 1]} : vector<8x96xf32> to vector<8x32xf32>
    %468 = vector.extract_strided_slice %465 {offsets = [0, 0], sizes = [8, 32], strides = [1, 1]} : vector<8x96xf32> to vector<8x32xf32>
    %469 = arith.addf %467, %468 : vector<8x32xf32>
    %470 = arith.negf %469 : vector<8x32xf32>
    %471 = math.exp %470 : vector<8x32xf32>
    %cst_92 = arith.constant 1.000000e+00 : f32
    %472 = vector.broadcast %cst_92 : f32 to vector<8x32xf32>
    %473 = arith.addf %472, %471 : vector<8x32xf32>
    %474 = arith.divf %472, %473 : vector<8x32xf32>
    %475 = vector.extract_strided_slice %466 {offsets = [0, 32], sizes = [8, 32], strides = [1, 1]} : vector<8x96xf32> to vector<8x32xf32>
    %476 = vector.extract_strided_slice %465 {offsets = [0, 32], sizes = [8, 32], strides = [1, 1]} : vector<8x96xf32> to vector<8x32xf32>
    %477 = arith.addf %475, %476 : vector<8x32xf32>
    %478 = arith.negf %477 : vector<8x32xf32>
    %479 = math.exp %478 : vector<8x32xf32>
    %cst_93 = arith.constant 1.000000e+00 : f32
    %480 = vector.broadcast %cst_93 : f32 to vector<8x32xf32>
    %481 = arith.addf %480, %479 : vector<8x32xf32>
    %482 = arith.divf %480, %481 : vector<8x32xf32>
    %483 = vector.extract_strided_slice %466 {offsets = [0, 64], sizes = [8, 32], strides = [1, 1]} : vector<8x96xf32> to vector<8x32xf32>
    %484 = vector.extract_strided_slice %465 {offsets = [0, 64], sizes = [8, 32], strides = [1, 1]} : vector<8x96xf32> to vector<8x32xf32>
    %485 = arith.addf %484, %260 : vector<8x32xf32>
    %486 = arith.mulf %474, %485 : vector<8x32xf32>
    %487 = arith.addf %483, %486 : vector<8x32xf32>
    %488 = math.tanh %487 : vector<8x32xf32>
    %cst_94 = arith.constant 1.000000e+00 : f32
    %489 = vector.broadcast %cst_94 : f32 to vector<8x32xf32>
    %490 = arith.subf %489, %482 : vector<8x32xf32>
    %491 = arith.mulf %490, %488 : vector<8x32xf32>
    %492 = arith.mulf %482, %464 : vector<8x32xf32>
    %493 = arith.addf %491, %492 : vector<8x32xf32>
    %c0_95 = arith.constant 0 : index
    %c0_96 = arith.constant 0 : index
    %494 = vector.load %arg9[%c0_95, %c0_96] : memref<32x10xf32, #tpu.memory_space<vmem>>, vector<32x10xf32>
    %cst_97 = arith.constant dense<0.000000e+00> : vector<8x10xf32>
    %495 = tpu.matmul %493, %494, %cst_97 {dimension_numbers = #tpu.dot_dimension_numbers<[1], [0], [0], [1], [0, 0, 1, 1], [], []>} : vector<8x32xf32>, vector<32x10xf32>, vector<8x10xf32> -> vector<8x10xf32>
    %c0_98 = arith.constant 0 : index
    %c0_99 = arith.constant 0 : index
    %496 = vector.load %arg10[%c0_98, %c0_99] : memref<1x10xf32, #tpu.memory_space<vmem>>, vector<1x10xf32>
    %497 = vector.broadcast %496 : vector<1x10xf32> to vector<8x10xf32>
    %498 = arith.addf %495, %497 : vector<8x10xf32>
    %c0_100 = arith.constant 0 : index
    %c0_101 = arith.constant 0 : index
    %499 = vector.load %arg11[%c0_100, %c0_101] : memref<8x10xf32, #tpu.memory_space<vmem>>, vector<8x10xf32>
    tpu.vector_store %arg11[%c0_100, %c0_101], %498 {strides = array<i32>} : memref<8x10xf32, #tpu.memory_space<vmem>>, vector<8x10xf32>,
    return
  }
}

</mosaic_0001>

<llo_original>
// kernel: gru_model.1
$region0: #{gru_model.1}
  #allocation0 [shape = 'u32[]', space=smem, size = 0x4, offset = 0x4, fixed_abs, tag = 'smem constant byte address 0x4 - core index']
  #allocation1 [shape = 'u32[144,128]{1,0:T(1,128)}', space=vmem, size = 0x12000, scoped, tag = 'internal scratch']
  #allocation2 [shape = 'f32[64,32]{1,0:T(8,128)}', space=vmem, size = 0x8000, scoped, tag = 'scratch operand']
  %s0 = inlined_call_operand.vmem [shape: f32[64,16], index: 0, kind: input, shape index: {}]
  %s1 = inlined_call_operand.vmem [shape: f32[16,96], index: 1, kind: input, shape index: {}]
  %s2 = inlined_call_operand.vmem [shape: f32[32,96], index: 2, kind: input, shape index: {}]
  %s3 = inlined_call_operand.vmem [shape: f32[1,96], index: 3, kind: input, shape index: {}]
  %s4 = inlined_call_operand.vmem [shape: f32[1,32], index: 4, kind: input, shape index: {}]
  %s5 = inlined_call_operand.vmem [shape: f32[32,96], index: 5, kind: input, shape index: {}]
  %s6 = inlined_call_operand.vmem [shape: f32[32,96], index: 6, kind: input, shape index: {}]
  %s7 = inlined_call_operand.vmem [shape: f32[1,96], index: 7, kind: input, shape index: {}]
  %s8 = inlined_call_operand.vmem [shape: f32[1,32], index: 8, kind: input, shape index: {}]
  %s9 = inlined_call_operand.vmem [shape: f32[32,10], index: 9, kind: input, shape index: {}]
  %s10 = inlined_call_operand.vmem [shape: f32[1,10], index: 10, kind: input, shape index: {}]
  %s11 = inlined_call_operand.vmem [shape: f32[8,10], index: 11, kind: output, shape index: {}]
  %s12 = sld [smem:[#allocation0]]
  $region54: #{gru_model.1} parent=0
    _
  %s14 = ssub.s32 1, %s12
  %s15 = scalar_select 0, %s14, %s12
  // Predicated region
  $region2: #{gru_model.1} parent=0 // pred_check
    _
  $region3: #{gru_model.1} parent=0 // pred_check_branch
    %17 = sbr.rel (0) target = $region5
  $region4: #{gru_model.1} parent=0 // pred_region
    _
  $region5: #{gru_model.1} parent=0 // pred_fallthru
    _
  // Predicated region
  $region6: #{gru_model.1} parent=0 // pred_check
    _
  $region7: #{gru_model.1} parent=0 // pred_check_branch
    %19 = sbr.rel (0) target = $region9
  $region8: #{gru_model.1} parent=0 // pred_region
    _
  $region9: #{gru_model.1} parent=0 // pred_fallthru
    _
  // Predicated region
  $region10: #{gru_model.1} parent=0 // pred_check
    _
  $region11: #{gru_model.1} parent=0 // pred_check_branch
    %21 = sbr.rel (0) target = $region13
  $region12: #{gru_model.1} parent=0 // pred_region
    _
  $region13: #{gru_model.1} parent=0 // pred_fallthru
    _
  // Predicated region
  $region14: #{gru_model.1} parent=0 // pred_check
    _
  $region15: #{gru_model.1} parent=0 // pred_check_branch
    %23 = sbr.rel (0) target = $region17
  $region16: #{gru_model.1} parent=0 // pred_region
    _
  $region17: #{gru_model.1} parent=0 // pred_fallthru
    _
  // Predicated region
  $region18: #{gru_model.1} parent=0 // pred_check
    _
  $region19: #{gru_model.1} parent=0 // pred_check_branch
    %25 = sbr.rel (0) target = $region21
  $region20: #{gru_model.1} parent=0 // pred_region
    _
  $region21: #{gru_model.1} parent=0 // pred_fallthru
    _
  // Predicated region
  $region22: #{gru_model.1} parent=0 // pred_check
    _
  $region23: #{gru_model.1} parent=0 // pred_check_branch
    %27 = sbr.rel (0) target = $region25
  $region24: #{gru_model.1} parent=0 // pred_region
    _
  $region25: #{gru_model.1} parent=0 // pred_fallthru
    _
  // Predicated region
  $region26: #{gru_model.1} parent=0 // pred_check
    _
  $region27: #{gru_model.1} parent=0 // pred_check_branch
    %29 = sbr.rel (0) target = $region29
  $region28: #{gru_model.1} parent=0 // pred_region
    _
  $region29: #{gru_model.1} parent=0 // pred_fallthru
    _
  // Predicated region
  $region30: #{gru_model.1} parent=0 // pred_check
    _
  $region31: #{gru_model.1} parent=0 // pred_check_branch
    %31 = sbr.rel (0) target = $region33
  $region32: #{gru_model.1} parent=0 // pred_region
    _
  $region33: #{gru_model.1} parent=0 // pred_fallthru
    _
  // Predicated region
  $region34: #{gru_model.1} parent=0 // pred_check
    _
  $region35: #{gru_model.1} parent=0 // pred_check_branch
    %33 = sbr.rel (0) target = $region37
  $region36: #{gru_model.1} parent=0 // pred_region
    _
  $region37: #{gru_model.1} parent=0 // pred_fallthru
    _
  // Predicated region
  $region38: #{gru_model.1} parent=0 // pred_check
    _
  $region39: #{gru_model.1} parent=0 // pred_check_branch
    %35 = sbr.rel (0) target = $region41
  $region40: #{gru_model.1} parent=0 // pred_region
    _
  $region41: #{gru_model.1} parent=0 // pred_fallthru
    _
  // Predicated region
  $region42: #{gru_model.1} parent=0 // pred_check
    _
  $region43: #{gru_model.1} parent=0 // pred_check_branch
    %37 = sbr.rel (0) target = $region45
  $region44: #{gru_model.1} parent=0 // pred_region
    _
  $region45: #{gru_model.1} parent=0 // pred_fallthru
    _
  %v38 = vld [vmem:[%s0] sm:$0xff]
  %v39 = vld [vmem:[%s0 + $0x8] sm:$0xff]
  %v40 = vld [vmem:[%s0 + $0x10] sm:$0xff]
  %v41 = vld [vmem:[%s0 + $0x18] sm:$0xff]
  %v42 = vld [vmem:[%s0 + $0x20] sm:$0xff]
  %v43 = vld [vmem:[%s0 + $0x28] sm:$0xff]
  %v44 = vld [vmem:[%s0 + $0x30] sm:$0xff]
  %v45 = vld [vmem:[%s0 + $0x38] sm:$0xff]
  %v46 = vld [vmem:[%s1] sm:$0xff]
  %v47 = vld [vmem:[%s1 + $0x8] sm:$0xff]
  %v48 = vld [vmem:[%s3] sm:$0x1]
  %v50 = vlaneseq
  %v51 = vshrl.u32 %v50, 7
  %v52 = vsub.s32 0, %v51
  %v53 = vrot.slane %v48, %v52
  %vm55 = vcmask 130048
  %v57 = vsel %vm55, %v38, 0
  %v60 = vsel %vm55, %v39, 0
  %v63 = vsel %vm55, %v40, 0
  %v66 = vsel %vm55, %v41, 0
  %v69 = vsel %vm55, %v42, 0
  %v72 = vsel %vm55, %v43, 0
  %v75 = vsel %vm55, %v44, 0
  %v78 = vsel %vm55, %v45, 0
  %80 = vmatprep.subr.mxu0 0.0
  %81 = vmatpush1.msra.mxu0 0.0
  %82 = vmatprep.subr.mxu0 0.0
  %83 = vmatpush1.msra.mxu0 0.0
  %84 = vmatprep.subr.mxu0 0.0
  %85 = vmatpush1.msra.mxu0 0.0
  %86 = vmatprep.subr.mxu0 0.0
  %87 = vmatpush1.msra.mxu0 0.0
  %88 = vmatprep.subr.mxu0 0.0
  %89 = vmatpush1.msra.mxu0 0.0
  %90 = vmatprep.subr.mxu0 0.0
  %91 = vmatpush1.msra.mxu0 0.0
  %92 = vmatprep.subr.mxu0 0.0
  %93 = vmatpush1.msra.mxu0 0.0
  %94 = vmatprep.subr.mxu0 0.0
  %95 = vmatpush1.msra.mxu0 0.0
  %96 = vmatprep.subr.mxu0 0.0
  %97 = vmatpush1.msra.mxu0 0.0
  %98 = vmatprep.subr.mxu0 0.0
  %99 = vmatpush1.msra.mxu0 0.0
  %100 = vmatprep.subr.mxu0 0.0
  %101 = vmatpush1.msra.mxu0 0.0
  %102 = vmatprep.subr.mxu0 0.0
  %103 = vmatpush1.msra.mxu0 0.0
  %104 = vmatprep.subr.mxu0 0.0
  %105 = vmatpush1.msra.mxu0 0.0
  %106 = vmatprep.subr.mxu0 0.0
  %107 = vmatpush1.msra.mxu0 0.0
  %108 = vmatprep.subr.mxu0 0.0
  %109 = vmatpush1.msra.mxu0 %v47
  %110 = vmatprep.subr.mxu0 0.0
  %111 = vmatpush1.msra.mxu0 %v46
  %112 = vmatprep.subr.mxu0 0.0
  %113 = vmatpush2.msra.mxu0 0.0
  %114 = vmatprep.subr.mxu0 0.0
  %115 = vmatpush2.msra.mxu0 0.0
  %116 = vmatprep.subr.mxu0 0.0
  %117 = vmatpush2.msra.mxu0 0.0
  %118 = vmatprep.subr.mxu0 0.0
  %119 = vmatpush2.msra.mxu0 0.0
  %120 = vmatprep.subr.mxu0 0.0
  %121 = vmatpush2.msra.mxu0 0.0
  %122 = vmatprep.subr.mxu0 0.0
  %123 = vmatpush2.msra.mxu0 0.0
  %124 = vmatprep.subr.mxu0 0.0
  %125 = vmatpush2.msra.mxu0 0.0
  %126 = vmatprep.subr.mxu0 0.0
  %127 = vmatpush2.msra.mxu0 0.0
  %128 = vmatprep.subr.mxu0 0.0
  %129 = vmatpush2.msra.mxu0 0.0
  %130 = vmatprep.subr.mxu0 0.0
  %131 = vmatpush2.msra.mxu0 0.0
  %132 = vmatprep.subr.mxu0 0.0
  %133 = vmatpush2.msra.mxu0 0.0
  %134 = vmatprep.subr.mxu0 0.0
  %135 = vmatpush2.msra.mxu0 0.0
  %136 = vmatprep.subr.mxu0 0.0
  %137 = vmatpush2.msra.mxu0 0.0
  %138 = vmatprep.subr.mxu0 0.0
  %139 = vmatpush2.msra.mxu0 0.0
  %140 = vmatprep.subr.mxu0 0.0
  %141 = vmatpush2.msra.mxu0 0.0
  %142 = vmatprep.subr.mxu0 0.0
  %143 = vmatpush2.msra.mxu0 0.0
  %144 = vmatprep.mubr.f32.mxu0 0.0
  %145 = vmatmul.mubr.f32.gmra.mxu0 %v57
  %v146 = vpop.f32.mrf.mxu0
  %v147 = vadd.f32 %v53, %v146
  %v148 = vpop.f32.mrf.mxu0
  %149 = vmatprep.mubr.f32.mxu0 0.0
  %150 = vmatmul.mubr.f32.gmra.mxu0 %v60
  %v151 = vpop.f32.mrf.mxu0
  %v152 = vadd.f32 %v53, %v151
  %v153 = vpop.f32.mrf.mxu0
  %154 = vmatprep.mubr.f32.mxu0 0.0
  %155 = vmatmul.mubr.f32.gmra.mxu0 %v63
  %v156 = vpop.f32.mrf.mxu0
  %v157 = vadd.f32 %v53, %v156
  %v158 = vpop.f32.mrf.mxu0
  %159 = vmatprep.mubr.f32.mxu0 0.0
  %160 = vmatmul.mubr.f32.gmra.mxu0 %v66
  %v161 = vpop.f32.mrf.mxu0
  %v162 = vadd.f32 %v53, %v161
  %v163 = vpop.f32.mrf.mxu0
  %164 = vmatprep.mubr.f32.mxu0 0.0
  %165 = vmatmul.mubr.f32.gmra.mxu0 %v69
  %v166 = vpop.f32.mrf.mxu0
  %v167 = vadd.f32 %v53, %v166
  %v168 = vpop.f32.mrf.mxu0
  %169 = vmatprep.mubr.f32.mxu0 0.0
  %170 = vmatmul.mubr.f32.gmra.mxu0 %v72
  %v171 = vpop.f32.mrf.mxu0
  %v172 = vadd.f32 %v53, %v171
  %v173 = vpop.f32.mrf.mxu0
  %174 = vmatprep.mubr.f32.mxu0 0.0
  %175 = vmatmul.mubr.f32.gmra.mxu0 %v75
  %v176 = vpop.f32.mrf.mxu0
  %v177 = vadd.f32 %v53, %v176
  %v178 = vpop.f32.mrf.mxu0
  %179 = vmatprep.mubr.f32.mxu0 0.0
  %180 = vmatmul.mubr.f32.gmra.mxu0 %v78
  %v181 = vpop.f32.mrf.mxu0
  %v182 = vadd.f32 %v53, %v181
  %v183 = vpop.f32.mrf.mxu0
  %184 = vdwg.mxu0
  %v185 = vld [vmem:[%s2] sm:$0xff]
  %v186 = vld [vmem:[%s2 + $0x8] sm:$0xff]
  %v187 = vld [vmem:[%s2 + $0x10] sm:$0xff]
  %v188 = vld [vmem:[%s2 + $0x18] sm:$0xff]
  %v189 = vld [vmem:[%s4] sm:$0x1]
  %v191 = vlaneseq
  %v192 = vshrl.u32 %v191, 7
  %v193 = vsub.s32 0, %v192
  %v194 = vrot.slane %v189, %v193
  %vm195 = vcmask 261120
  %v197 = vsel %vm195, 0.0, 0
  %199 = vmatprep.subr.mxu0 0.0
  %200 = vmatpush1.msra.mxu0 0.0
  %201 = vmatprep.subr.mxu0 0.0
  %202 = vmatpush1.msra.mxu0 0.0
  %203 = vmatprep.subr.mxu0 0.0
  %204 = vmatpush1.msra.mxu0 0.0
  %205 = vmatprep.subr.mxu0 0.0
  %206 = vmatpush1.msra.mxu0 0.0
  %207 = vmatprep.subr.mxu0 0.0
  %208 = vmatpush1.msra.mxu0 0.0
  %209 = vmatprep.subr.mxu0 0.0
  %210 = vmatpush1.msra.mxu0 0.0
  %211 = vmatprep.subr.mxu0 0.0
  %212 = vmatpush1.msra.mxu0 0.0
  %213 = vmatprep.subr.mxu0 0.0
  %214 = vmatpush1.msra.mxu0 0.0
  %215 = vmatprep.subr.mxu0 0.0
  %216 = vmatpush1.msra.mxu0 0.0
  %217 = vmatprep.subr.mxu0 0.0
  %218 = vmatpush1.msra.mxu0 0.0
  %219 = vmatprep.subr.mxu0 0.0
  %220 = vmatpush1.msra.mxu0 0.0
  %221 = vmatprep.subr.mxu0 0.0
  %222 = vmatpush1.msra.mxu0 0.0
  %223 = vmatprep.subr.mxu0 0.0
  %224 = vmatpush1.msra.mxu0 %v188
  %225 = vmatprep.subr.mxu0 0.0
  %226 = vmatpush1.msra.mxu0 %v187
  %227 = vmatprep.subr.mxu0 0.0
  %228 = vmatpush1.msra.mxu0 %v186
  %229 = vmatprep.subr.mxu0 0.0
  %230 = vmatpush1.msra.mxu0 %v185
  %231 = vmatprep.subr.mxu0 0.0
  %232 = vmatpush2.msra.mxu0 0.0
  %233 = vmatprep.subr.mxu0 0.0
  %234 = vmatpush2.msra.mxu0 0.0
  %235 = vmatprep.subr.mxu0 0.0
  %236 = vmatpush2.msra.mxu0 0.0
  %237 = vmatprep.subr.mxu0 0.0
  %238 = vmatpush2.msra.mxu0 0.0
  %239 = vmatprep.subr.mxu0 0.0
  %240 = vmatpush2.msra.mxu0 0.0
  %241 = vmatprep.subr.mxu0 0.0
  %242 = vmatpush2.msra.mxu0 0.0
  %243 = vmatprep.subr.mxu0 0.0
  %244 = vmatpush2.msra.mxu0 0.0
  %245 = vmatprep.subr.mxu0 0.0
  %246 = vmatpush2.msra.mxu0 0.0
  %247 = vmatprep.subr.mxu0 0.0
  %248 = vmatpush2.msra.mxu0 0.0
  %249 = vmatprep.subr.mxu0 0.0
  %250 = vmatpush2.msra.mxu0 0.0
  %251 = vmatprep.subr.mxu0 0.0
  %252 = vmatpush2.msra.mxu0 0.0
  %253 = vmatprep.subr.mxu0 0.0
  %254 = vmatpush2.msra.mxu0 0.0
  %255 = vmatprep.subr.mxu0 0.0
  %256 = vmatpush2.msra.mxu0 0.0
  %257 = vmatprep.subr.mxu0 0.0
  %258 = vmatpush2.msra.mxu0 0.0
  %259 = vmatprep.subr.mxu0 0.0
  %260 = vmatpush2.msra.mxu0 0.0
  %261 = vmatprep.subr.mxu0 0.0
  %262 = vmatpush2.msra.mxu0 0.0
  %263 = vmatprep.mubr.f32.mxu0 0.0
  %264 = vmatmul.mubr.f32.gmra.mxu0 %v197
  %v265 = vpop.f32.mrf.mxu0
  %v266 = vadd.f32 0.0, %v265
  %v267 = vpop.f32.mrf.mxu0
  %268 = vdwg.mxu0
  %v269 = vadd.f32 %v147, %v266
  %v270 = vxor.u32 %v269, 2147483648
  %v271 = vmul.f32 %v270, 1.442695
  %v272 = vpow.pop %v271
  %v273 = vadd.f32 %v272, 1.0
  %v274 = vrcp.pop %v273
  %v275 = vmul.f32 1.0, %v274
  %276 = vrot.lane.b32.xlu0 %v194, 64
  %v277 = vpop.permute.xlu0 %276
  %v279 = vadd.f32 %v266, %v277
  %281 = vrot.lane.b32.xlu0 %v279, 64
  %v282 = vpop.permute.xlu0 %281
  %v284 = vmul.f32 %v275, %v282
  %286 = vrot.lane.b32.xlu0 %v284, 64
  %v287 = vpop.permute.xlu0 %286
  %v289 = vadd.f32 %v147, %v287
  %v290 = vtanh.pop %v289
  %v291 = vsub.f32 1.0, %v275
  %293 = vrot.lane.b32.xlu0 %v290, 96
  %v294 = vpop.permute.xlu0 %293
  %v296 = vmul.f32 %v291, %v294
  %v297 = vmul.f32 %v275, 0.0
  %v298 = vadd.f32 %v296, %v297
  %300 = vrot.lane.b32.xlu0 %v298, 96
  %v301 = vpop.permute.xlu0 %300
  %303 = vst.msk [vmem:[#allocation2] sm:$0xff] %vm195, %v301
  %v304 = vsel %vm195, %v301, 0
  %306 = vmatprep.subr.mxu0 0.0
  %307 = vmatpush1.msra.mxu0 0.0
  %308 = vmatprep.subr.mxu0 0.0
  %309 = vmatpush1.msra.mxu0 0.0
  %310 = vmatprep.subr.mxu0 0.0
  %311 = vmatpush1.msra.mxu0 0.0
  %312 = vmatprep.subr.mxu0 0.0
  %313 = vmatpush1.msra.mxu0 0.0
  %314 = vmatprep.subr.mxu0 0.0
  %315 = vmatpush1.msra.mxu0 0.0
  %316 = vmatprep.subr.mxu0 0.0
  %317 = vmatpush1.msra.mxu0 0.0
  %318 = vmatprep.subr.mxu0 0.0
  %319 = vmatpush1.msra.mxu0 0.0
  %320 = vmatprep.subr.mxu0 0.0
  %321 = vmatpush1.msra.mxu0 0.0
  %322 = vmatprep.subr.mxu0 0.0
  %323 = vmatpush1.msra.mxu0 0.0
  %324 = vmatprep.subr.mxu0 0.0
  %325 = vmatpush1.msra.mxu0 0.0
  %326 = vmatprep.subr.mxu0 0.0
  %327 = vmatpush1.msra.mxu0 0.0
  %328 = vmatprep.subr.mxu0 0.0
  %329 = vmatpush1.msra.mxu0 0.0
  %330 = vmatprep.subr.mxu0 0.0
  %331 = vmatpush1.msra.mxu0 %v188
  %332 = vmatprep.subr.mxu0 0.0
  %333 = vmatpush1.msra.mxu0 %v187
  %334 = vmatprep.subr.mxu0 0.0
  %335 = vmatpush1.msra.mxu0 %v186
  %336 = vmatprep.subr.mxu0 0.0
  %337 = vmatpush1.msra.mxu0 %v185
  %338 = vmatprep.subr.mxu0 0.0
  %339 = vmatpush2.msra.mxu0 0.0
  %340 = vmatprep.subr.mxu0 0.0
  %341 = vmatpush2.msra.mxu0 0.0
  %342 = vmatprep.subr.mxu0 0.0
  %343 = vmatpush2.msra.mxu0 0.0
  %344 = vmatprep.subr.mxu0 0.0
  %345 = vmatpush2.msra.mxu0 0.0
  %346 = vmatprep.subr.mxu0 0.0
  %347 = vmatpush2.msra.mxu0 0.0
  %348 = vmatprep.subr.mxu0 0.0
  %349 = vmatpush2.msra.mxu0 0.0
  %350 = vmatprep.subr.mxu0 0.0
  %351 = vmatpush2.msra.mxu0 0.0
  %352 = vmatprep.subr.mxu0 0.0
  %353 = vmatpush2.msra.mxu0 0.0
  %354 = vmatprep.subr.mxu0 0.0
  %355 = vmatpush2.msra.mxu0 0.0
  %356 = vmatprep.subr.mxu0 0.0
  %357 = vmatpush2.msra.mxu0 0.0
  %358 = vmatprep.subr.mxu0 0.0
  %359 = vmatpush2.msra.mxu0 0.0
  %360 = vmatprep.subr.mxu0 0.0
  %361 = vmatpush2.msra.mxu0 0.0
  %362 = vmatprep.subr.mxu0 0.0
  %363 = vmatpush2.msra.mxu0 0.0
  %364 = vmatprep.subr.mxu0 0.0
  %365 = vmatpush2.msra.mxu0 0.0
  %366 = vmatprep.subr.mxu0 0.0
  %367 = vmatpush2.msra.mxu0 0.0
  %368 = vmatprep.subr.mxu0 0.0
  %369 = vmatpush2.msra.mxu0 0.0
  %370 = vmatprep.mubr.f32.mxu0 0.0
  %371 = vmatmul.mubr.f32.gmra.mxu0 %v304
  %v372 = vpop.f32.mrf.mxu0
  %v373 = vadd.f32 0.0, %v372
  %v374 = vpop.f32.mrf.mxu0
  %375 = vdwg.mxu0
  %v376 = vadd.f32 %v152, %v373
  %v377 = vxor.u32 %v376, 2147483648
  %v378 = vmul.f32 %v377, 1.442695
  %v379 = vpow.pop %v378
  %v380 = vadd.f32 %v379, 1.0
  %v381 = vrcp.pop %v380
  %v382 = vmul.f32 1.0, %v381
  %v383 = vadd.f32 %v373, %v277
  %385 = vrot.lane.b32.xlu0 %v383, 64
  %v386 = vpop.permute.xlu0 %385
  %v388 = vmul.f32 %v382, %v386
  %390 = vrot.lane.b32.xlu0 %v388, 64
  %v391 = vpop.permute.xlu0 %390
  %v393 = vadd.f32 %v152, %v391
  %v394 = vtanh.pop %v393
  %v395 = vsub.f32 1.0, %v382
  %397 = vrot.lane.b32.xlu0 %v394, 96
  %v398 = vpop.permute.xlu0 %397
  %v400 = vmul.f32 %v395, %v398
  %v401 = vmul.f32 %v382, %v298
  %v402 = vadd.f32 %v400, %v401
  %404 = vrot.lane.b32.xlu0 %v402, 96
  %v405 = vpop.permute.xlu0 %404
  %407 = vst.msk [vmem:[#allocation2 + $0x8] sm:$0xff] %vm195, %v405
  %v408 = vsel %vm195, %v405, 0
  %410 = vmatprep.subr.mxu0 0.0
  %411 = vmatpush1.msra.mxu0 0.0
  %412 = vmatprep.subr.mxu0 0.0
  %413 = vmatpush1.msra.mxu0 0.0
  %414 = vmatprep.subr.mxu0 0.0
  %415 = vmatpush1.msra.mxu0 0.0
  %416 = vmatprep.subr.mxu0 0.0
  %417 = vmatpush1.msra.mxu0 0.0
  %418 = vmatprep.subr.mxu0 0.0
  %419 = vmatpush1.msra.mxu0 0.0
  %420 = vmatprep.subr.mxu0 0.0
  %421 = vmatpush1.msra.mxu0 0.0
  %422 = vmatprep.subr.mxu0 0.0
  %423 = vmatpush1.msra.mxu0 0.0
  %424 = vmatprep.subr.mxu0 0.0
  %425 = vmatpush1.msra.mxu0 0.0
  %426 = vmatprep.subr.mxu0 0.0
  %427 = vmatpush1.msra.mxu0 0.0
  %428 = vmatprep.subr.mxu0 0.0
  %429 = vmatpush1.msra.mxu0 0.0
  %430 = vmatprep.subr.mxu0 0.0
  %431 = vmatpush1.msra.mxu0 0.0
  %432 = vmatprep.subr.mxu0 0.0
  %433 = vmatpush1.msra.mxu0 0.0
  %434 = vmatprep.subr.mxu0 0.0
  %435 = vmatpush1.msra.mxu0 %v188
  %436 = vmatprep.subr.mxu0 0.0
  %437 = vmatpush1.msra.mxu0 %v187
  %438 = vmatprep.subr.mxu0 0.0
  %439 = vmatpush1.msra.mxu0 %v186
  %440 = vmatprep.subr.mxu0 0.0
  %441 = vmatpush1.msra.mxu0 %v185
  %442 = vmatprep.subr.mxu0 0.0
  %443 = vmatpush2.msra.mxu0 0.0
  %444 = vmatprep.subr.mxu0 0.0
  %445 = vmatpush2.msra.mxu0 0.0
  %446 = vmatprep.subr.mxu0 0.0
  %447 = vmatpush2.msra.mxu0 0.0
  %448 = vmatprep.subr.mxu0 0.0
  %449 = vmatpush2.msra.mxu0 0.0
  %450 = vmatprep.subr.mxu0 0.0
  %451 = vmatpush2.msra.mxu0 0.0
  %452 = vmatprep.subr.mxu0 0.0
  %453 = vmatpush2.msra.mxu0 0.0
  %454 = vmatprep.subr.mxu0 0.0
  %455 = vmatpush2.msra.mxu0 0.0
  %456 = vmatprep.subr.mxu0 0.0
  %457 = vmatpush2.msra.mxu0 0.0
  %458 = vmatprep.subr.mxu0 0.0
  %459 = vmatpush2.msra.mxu0 0.0
  %460 = vmatprep.subr.mxu0 0.0
  %461 = vmatpush2.msra.mxu0 0.0
  %462 = vmatprep.subr.mxu0 0.0
  %463 = vmatpush2.msra.mxu0 0.0
  %464 = vmatprep.subr.mxu0 0.0
  %465 = vmatpush2.msra.mxu0 0.0
  %466 = vmatprep.subr.mxu0 0.0
  %467 = vmatpush2.msra.mxu0 0.0
  %468 = vmatprep.subr.mxu0 0.0
  %469 = vmatpush2.msra.mxu0 0.0
  %470 = vmatprep.subr.mxu0 0.0
  %471 = vmatpush2.msra.mxu0 0.0
  %472 = vmatprep.subr.mxu0 0.0
  %473 = vmatpush2.msra.mxu0 0.0
  %474 = vmatprep.mubr.f32.mxu0 0.0
  %475 = vmatmul.mubr.f32.gmra.mxu0 %v408
  %v476 = vpop.f32.mrf.mxu0
  %v477 = vadd.f32 0.0, %v476
  %v478 = vpop.f32.mrf.mxu0
  %479 = vdwg.mxu0
  %v480 = vadd.f32 %v157, %v477
  %v481 = vxor.u32 %v480, 2147483648
  %v482 = vmul.f32 %v481, 1.442695
  %v483 = vpow.pop %v482
  %v484 = vadd.f32 %v483, 1.0
  %v485 = vrcp.pop %v484
  %v486 = vmul.f32 1.0, %v485
  %v487 = vadd.f32 %v477, %v277
  %489 = vrot.lane.b32.xlu0 %v487, 64
  %v490 = vpop.permute.xlu0 %489
  %v492 = vmul.f32 %v486, %v490
  %494 = vrot.lane.b32.xlu0 %v492, 64
  %v495 = vpop.permute.xlu0 %494
  %v497 = vadd.f32 %v157, %v495
  %v498 = vtanh.pop %v497
  %v499 = vsub.f32 1.0, %v486
  %501 = vrot.lane.b32.xlu0 %v498, 96
  %v502 = vpop.permute.xlu0 %501
  %v504 = vmul.f32 %v499, %v502
  %v505 = vmul.f32 %v486, %v402
  %v506 = vadd.f32 %v504, %v505
  %508 = vrot.lane.b32.xlu0 %v506, 96
  %v509 = vpop.permute.xlu0 %508
  %511 = vst.msk [vmem:[#allocation2 + $0x10] sm:$0xff] %vm195, %v509
  %v512 = vsel %vm195, %v509, 0
  %514 = vmatprep.subr.mxu0 0.0
  %515 = vmatpush1.msra.mxu0 0.0
  %516 = vmatprep.subr.mxu0 0.0
  %517 = vmatpush1.msra.mxu0 0.0
  %518 = vmatprep.subr.mxu0 0.0
  %519 = vmatpush1.msra.mxu0 0.0
  %520 = vmatprep.subr.mxu0 0.0
  %521 = vmatpush1.msra.mxu0 0.0
  %522 = vmatprep.subr.mxu0 0.0
  %523 = vmatpush1.msra.mxu0 0.0
  %524 = vmatprep.subr.mxu0 0.0
  %525 = vmatpush1.msra.mxu0 0.0
  %526 = vmatprep.subr.mxu0 0.0
  %527 = vmatpush1.msra.mxu0 0.0
  %528 = vmatprep.subr.mxu0 0.0
  %529 = vmatpush1.msra.mxu0 0.0
  %530 = vmatprep.subr.mxu0 0.0
  %531 = vmatpush1.msra.mxu0 0.0
  %532 = vmatprep.subr.mxu0 0.0
  %533 = vmatpush1.msra.mxu0 0.0
  %534 = vmatprep.subr.mxu0 0.0
  %535 = vmatpush1.msra.mxu0 0.0
  %536 = vmatprep.subr.mxu0 0.0
  %537 = vmatpush1.msra.mxu0 0.0
  %538 = vmatprep.subr.mxu0 0.0
  %539 = vmatpush1.msra.mxu0 %v188
  %540 = vmatprep.subr.mxu0 0.0
  %541 = vmatpush1.msra.mxu0 %v187
  %542 = vmatprep.subr.mxu0 0.0
  %543 = vmatpush1.msra.mxu0 %v186
  %544 = vmatprep.subr.mxu0 0.0
  %545 = vmatpush1.msra.mxu0 %v185
  %546 = vmatprep.subr.mxu0 0.0
  %547 = vmatpush2.msra.mxu0 0.0
  %548 = vmatprep.subr.mxu0 0.0
  %549 = vmatpush2.msra.mxu0 0.0
  %550 = vmatprep.subr.mxu0 0.0
  %551 = vmatpush2.msra.mxu0 0.0
  %552 = vmatprep.subr.mxu0 0.0
  %553 = vmatpush2.msra.mxu0 0.0
  %554 = vmatprep.subr.mxu0 0.0
  %555 = vmatpush2.msra.mxu0 0.0
  %556 = vmatprep.subr.mxu0 0.0
  %557 = vmatpush2.msra.mxu0 0.0
  %558 = vmatprep.subr.mxu0 0.0
  %559 = vmatpush2.msra.mxu0 0.0
  %560 = vmatprep.subr.mxu0 0.0
  %561 = vmatpush2.msra.mxu0 0.0
  %562 = vmatprep.subr.mxu0 0.0
  %563 = vmatpush2.msra.mxu0 0.0
  %564 = vmatprep.subr.mxu0 0.0
  %565 = vmatpush2.msra.mxu0 0.0
  %566 = vmatprep.subr.mxu0 0.0
  %567 = vmatpush2.msra.mxu0 0.0
  %568 = vmatprep.subr.mxu0 0.0
  %569 = vmatpush2.msra.mxu0 0.0
  %570 = vmatprep.subr.mxu0 0.0
  %571 = vmatpush2.msra.mxu0 0.0
  %572 = vmatprep.subr.mxu0 0.0
  %573 = vmatpush2.msra.mxu0 0.0
  %574 = vmatprep.subr.mxu0 0.0
  %575 = vmatpush2.msra.mxu0 0.0
  %576 = vmatprep.subr.mxu0 0.0
  %577 = vmatpush2.msra.mxu0 0.0
  %578 = vmatprep.mubr.f32.mxu0 0.0
  %579 = vmatmul.mubr.f32.gmra.mxu0 %v512
  %v580 = vpop.f32.mrf.mxu0
  %v581 = vadd.f32 0.0, %v580
  %v582 = vpop.f32.mrf.mxu0
  %583 = vdwg.mxu0
  %v584 = vadd.f32 %v162, %v581
  %v585 = vxor.u32 %v584, 2147483648
  %v586 = vmul.f32 %v585, 1.442695
  %v587 = vpow.pop %v586
  %v588 = vadd.f32 %v587, 1.0
  %v589 = vrcp.pop %v588
  %v590 = vmul.f32 1.0, %v589
  %v591 = vadd.f32 %v581, %v277
  %593 = vrot.lane.b32.xlu0 %v591, 64
  %v594 = vpop.permute.xlu0 %593
  %v596 = vmul.f32 %v590, %v594
  %598 = vrot.lane.b32.xlu0 %v596, 64
  %v599 = vpop.permute.xlu0 %598
  %v601 = vadd.f32 %v162, %v599
  %v602 = vtanh.pop %v601
  %v603 = vsub.f32 1.0, %v590
  %605 = vrot.lane.b32.xlu0 %v602, 96
  %v606 = vpop.permute.xlu0 %605
  %v608 = vmul.f32 %v603, %v606
  %v609 = vmul.f32 %v590, %v506
  %v610 = vadd.f32 %v608, %v609
  %612 = vrot.lane.b32.xlu0 %v610, 96
  %v613 = vpop.permute.xlu0 %612
  %615 = vst.msk [vmem:[#allocation2 + $0x18] sm:$0xff] %vm195, %v613
  %v616 = vsel %vm195, %v613, 0
  %618 = vmatprep.subr.mxu0 0.0
  %619 = vmatpush1.msra.mxu0 0.0
  %620 = vmatprep.subr.mxu0 0.0
  %621 = vmatpush1.msra.mxu0 0.0
  %622 = vmatprep.subr.mxu0 0.0
  %623 = vmatpush1.msra.mxu0 0.0
  %624 = vmatprep.subr.mxu0 0.0
  %625 = vmatpush1.msra.mxu0 0.0
  %626 = vmatprep.subr.mxu0 0.0
  %627 = vmatpush1.msra.mxu0 0.0
  %628 = vmatprep.subr.mxu0 0.0
  %629 = vmatpush1.msra.mxu0 0.0
  %630 = vmatprep.subr.mxu0 0.0
  %631 = vmatpush1.msra.mxu0 0.0
  %632 = vmatprep.subr.mxu0 0.0
  %633 = vmatpush1.msra.mxu0 0.0
  %634 = vmatprep.subr.mxu0 0.0
  %635 = vmatpush1.msra.mxu0 0.0
  %636 = vmatprep.subr.mxu0 0.0
  %637 = vmatpush1.msra.mxu0 0.0
  %638 = vmatprep.subr.mxu0 0.0
  %639 = vmatpush1.msra.mxu0 0.0
  %640 = vmatprep.subr.mxu0 0.0
  %641 = vmatpush1.msra.mxu0 0.0
  %642 = vmatprep.subr.mxu0 0.0
  %643 = vmatpush1.msra.mxu0 %v188
  %644 = vmatprep.subr.mxu0 0.0
  %645 = vmatpush1.msra.mxu0 %v187
  %646 = vmatprep.subr.mxu0 0.0
  %647 = vmatpush1.msra.mxu0 %v186
  %648 = vmatprep.subr.mxu0 0.0
  %649 = vmatpush1.msra.mxu0 %v185
  %650 = vmatprep.subr.mxu0 0.0
  %651 = vmatpush2.msra.mxu0 0.0
  %652 = vmatprep.subr.mxu0 0.0
  %653 = vmatpush2.msra.mxu0 0.0
  %654 = vmatprep.subr.mxu0 0.0
  %655 = vmatpush2.msra.mxu0 0.0
  %656 = vmatprep.subr.mxu0 0.0
  %657 = vmatpush2.msra.mxu0 0.0
  %658 = vmatprep.subr.mxu0 0.0
  %659 = vmatpush2.msra.mxu0 0.0
  %660 = vmatprep.subr.mxu0 0.0
  %661 = vmatpush2.msra.mxu0 0.0
  %662 = vmatprep.subr.mxu0 0.0
  %663 = vmatpush2.msra.mxu0 0.0
  %664 = vmatprep.subr.mxu0 0.0
  %665 = vmatpush2.msra.mxu0 0.0
  %666 = vmatprep.subr.mxu0 0.0
  %667 = vmatpush2.msra.mxu0 0.0
  %668 = vmatprep.subr.mxu0 0.0
  %669 = vmatpush2.msra.mxu0 0.0
  %670 = vmatprep.subr.mxu0 0.0
  %671 = vmatpush2.msra.mxu0 0.0
  %672 = vmatprep.subr.mxu0 0.0
  %673 = vmatpush2.msra.mxu0 0.0
  %674 = vmatprep.subr.mxu0 0.0
  %675 = vmatpush2.msra.mxu0 0.0
  %676 = vmatprep.subr.mxu0 0.0
  %677 = vmatpush2.msra.mxu0 0.0
  %678 = vmatprep.subr.mxu0 0.0
  %679 = vmatpush2.msra.mxu0 0.0
  %680 = vmatprep.subr.mxu0 0.0
  %681 = vmatpush2.msra.mxu0 0.0
  %682 = vmatprep.mubr.f32.mxu0 0.0
  %683 = vmatmul.mubr.f32.gmra.mxu0 %v616
  %v684 = vpop.f32.mrf.mxu0
  %v685 = vadd.f32 0.0, %v684
  %v686 = vpop.f32.mrf.mxu0
  %687 = vdwg.mxu0
  %v688 = vadd.f32 %v167, %v685
  %v689 = vxor.u32 %v688, 2147483648
  %v690 = vmul.f32 %v689, 1.442695
  %v691 = vpow.pop %v690
  %v692 = vadd.f32 %v691, 1.0
  %v693 = vrcp.pop %v692
  %v694 = vmul.f32 1.0, %v693
  %v695 = vadd.f32 %v685, %v277
  %697 = vrot.lane.b32.xlu0 %v695, 64
  %v698 = vpop.permute.xlu0 %697
  %v700 = vmul.f32 %v694, %v698
  %702 = vrot.lane.b32.xlu0 %v700, 64
  %v703 = vpop.permute.xlu0 %702
  %v705 = vadd.f32 %v167, %v703
  %v706 = vtanh.pop %v705
  %v707 = vsub.f32 1.0, %v694
  %709 = vrot.lane.b32.xlu0 %v706, 96
  %v710 = vpop.permute.xlu0 %709
  %v712 = vmul.f32 %v707, %v710
  %v713 = vmul.f32 %v694, %v610
  %v714 = vadd.f32 %v712, %v713
  %716 = vrot.lane.b32.xlu0 %v714, 96
  %v717 = vpop.permute.xlu0 %716
  %719 = vst.msk [vmem:[#allocation2 + $0x20] sm:$0xff] %vm195, %v717
  %v720 = vsel %vm195, %v717, 0
  %722 = vmatprep.subr.mxu0 0.0
  %723 = vmatpush1.msra.mxu0 0.0
  %724 = vmatprep.subr.mxu0 0.0
  %725 = vmatpush1.msra.mxu0 0.0
  %726 = vmatprep.subr.mxu0 0.0
  %727 = vmatpush1.msra.mxu0 0.0
  %728 = vmatprep.subr.mxu0 0.0
  %729 = vmatpush1.msra.mxu0 0.0
  %730 = vmatprep.subr.mxu0 0.0
  %731 = vmatpush1.msra.mxu0 0.0
  %732 = vmatprep.subr.mxu0 0.0
  %733 = vmatpush1.msra.mxu0 0.0
  %734 = vmatprep.subr.mxu0 0.0
  %735 = vmatpush1.msra.mxu0 0.0
  %736 = vmatprep.subr.mxu0 0.0
  %737 = vmatpush1.msra.mxu0 0.0
  %738 = vmatprep.subr.mxu0 0.0
  %739 = vmatpush1.msra.mxu0 0.0
  %740 = vmatprep.subr.mxu0 0.0
  %741 = vmatpush1.msra.mxu0 0.0
  %742 = vmatprep.subr.mxu0 0.0
  %743 = vmatpush1.msra.mxu0 0.0
  %744 = vmatprep.subr.mxu0 0.0
  %745 = vmatpush1.msra.mxu0 0.0
  %746 = vmatprep.subr.mxu0 0.0
  %747 = vmatpush1.msra.mxu0 %v188
  %748 = vmatprep.subr.mxu0 0.0
  %749 = vmatpush1.msra.mxu0 %v187
  %750 = vmatprep.subr.mxu0 0.0
  %751 = vmatpush1.msra.mxu0 %v186
  %752 = vmatprep.subr.mxu0 0.0
  %753 = vmatpush1.msra.mxu0 %v185
  %754 = vmatprep.subr.mxu0 0.0
  %755 = vmatpush2.msra.mxu0 0.0
  %756 = vmatprep.subr.mxu0 0.0
  %757 = vmatpush2.msra.mxu0 0.0
  %758 = vmatprep.subr.mxu0 0.0
  %759 = vmatpush2.msra.mxu0 0.0
  %760 = vmatprep.subr.mxu0 0.0
  %761 = vmatpush2.msra.mxu0 0.0
  %762 = vmatprep.subr.mxu0 0.0
  %763 = vmatpush2.msra.mxu0 0.0
  %764 = vmatprep.subr.mxu0 0.0
  %765 = vmatpush2.msra.mxu0 0.0
  %766 = vmatprep.subr.mxu0 0.0
  %767 = vmatpush2.msra.mxu0 0.0
  %768 = vmatprep.subr.mxu0 0.0
  %769 = vmatpush2.msra.mxu0 0.0
  %770 = vmatprep.subr.mxu0 0.0
  %771 = vmatpush2.msra.mxu0 0.0
  %772 = vmatprep.subr.mxu0 0.0
  %773 = vmatpush2.msra.mxu0 0.0
  %774 = vmatprep.subr.mxu0 0.0
  %775 = vmatpush2.msra.mxu0 0.0
  %776 = vmatprep.subr.mxu0 0.0
  %777 = vmatpush2.msra.mxu0 0.0
  %778 = vmatprep.subr.mxu0 0.0
  %779 = vmatpush2.msra.mxu0 0.0
  %780 = vmatprep.subr.mxu0 0.0
  %781 = vmatpush2.msra.mxu0 0.0
  %782 = vmatprep.subr.mxu0 0.0
  %783 = vmatpush2.msra.mxu0 0.0
  %784 = vmatprep.subr.mxu0 0.0
  %785 = vmatpush2.msra.mxu0 0.0
  %786 = vmatprep.mubr.f32.mxu0 0.0
  %787 = vmatmul.mubr.f32.gmra.mxu0 %v720
  %v788 = vpop.f32.mrf.mxu0
  %v789 = vadd.f32 0.0, %v788
  %v790 = vpop.f32.mrf.mxu0
  %791 = vdwg.mxu0
  %v792 = vadd.f32 %v172, %v789
  %v793 = vxor.u32 %v792, 2147483648
  %v794 = vmul.f32 %v793, 1.442695
  %v795 = vpow.pop %v794
  %v796 = vadd.f32 %v795, 1.0
  %v797 = vrcp.pop %v796
  %v798 = vmul.f32 1.0, %v797
  %v799 = vadd.f32 %v789, %v277
  %801 = vrot.lane.b32.xlu0 %v799, 64
  %v802 = vpop.permute.xlu0 %801
  %v804 = vmul.f32 %v798, %v802
  %806 = vrot.lane.b32.xlu0 %v804, 64
  %v807 = vpop.permute.xlu0 %806
  %v809 = vadd.f32 %v172, %v807
  %v810 = vtanh.pop %v809
  %v811 = vsub.f32 1.0, %v798
  %813 = vrot.lane.b32.xlu0 %v810, 96
  %v814 = vpop.permute.xlu0 %813
  %v816 = vmul.f32 %v811, %v814
  %v817 = vmul.f32 %v798, %v714
  %v818 = vadd.f32 %v816, %v817
  %820 = vrot.lane.b32.xlu0 %v818, 96
  %v821 = vpop.permute.xlu0 %820
  %823 = vst.msk [vmem:[#allocation2 + $0x28] sm:$0xff] %vm195, %v821
  %v824 = vsel %vm195, %v821, 0
  %826 = vmatprep.subr.mxu0 0.0
  %827 = vmatpush1.msra.mxu0 0.0
  %828 = vmatprep.subr.mxu0 0.0
  %829 = vmatpush1.msra.mxu0 0.0
  %830 = vmatprep.subr.mxu0 0.0
  %831 = vmatpush1.msra.mxu0 0.0
  %832 = vmatprep.subr.mxu0 0.0
  %833 = vmatpush1.msra.mxu0 0.0
  %834 = vmatprep.subr.mxu0 0.0
  %835 = vmatpush1.msra.mxu0 0.0
  %836 = vmatprep.subr.mxu0 0.0
  %837 = vmatpush1.msra.mxu0 0.0
  %838 = vmatprep.subr.mxu0 0.0
  %839 = vmatpush1.msra.mxu0 0.0
  %840 = vmatprep.subr.mxu0 0.0
  %841 = vmatpush1.msra.mxu0 0.0
  %842 = vmatprep.subr.mxu0 0.0
  %843 = vmatpush1.msra.mxu0 0.0
  %844 = vmatprep.subr.mxu0 0.0
  %845 = vmatpush1.msra.mxu0 0.0
  %846 = vmatprep.subr.mxu0 0.0
  %847 = vmatpush1.msra.mxu0 0.0
  %848 = vmatprep.subr.mxu0 0.0
  %849 = vmatpush1.msra.mxu0 0.0
  %850 = vmatprep.subr.mxu0 0.0
  %851 = vmatpush1.msra.mxu0 %v188
  %852 = vmatprep.subr.mxu0 0.0
  %853 = vmatpush1.msra.mxu0 %v187
  %854 = vmatprep.subr.mxu0 0.0
  %855 = vmatpush1.msra.mxu0 %v186
  %856 = vmatprep.subr.mxu0 0.0
  %857 = vmatpush1.msra.mxu0 %v185
  %858 = vmatprep.subr.mxu0 0.0
  %859 = vmatpush2.msra.mxu0 0.0
  %860 = vmatprep.subr.mxu0 0.0
  %861 = vmatpush2.msra.mxu0 0.0
  %862 = vmatprep.subr.mxu0 0.0
  %863 = vmatpush2.msra.mxu0 0.0
  %864 = vmatprep.subr.mxu0 0.0
  %865 = vmatpush2.msra.mxu0 0.0
  %866 = vmatprep.subr.mxu0 0.0
  %867 = vmatpush2.msra.mxu0 0.0
  %868 = vmatprep.subr.mxu0 0.0
  %869 = vmatpush2.msra.mxu0 0.0
  %870 = vmatprep.subr.mxu0 0.0
  %871 = vmatpush2.msra.mxu0 0.0
  %872 = vmatprep.subr.mxu0 0.0
  %873 = vmatpush2.msra.mxu0 0.0
  %874 = vmatprep.subr.mxu0 0.0
  %875 = vmatpush2.msra.mxu0 0.0
  %876 = vmatprep.subr.mxu0 0.0
  %877 = vmatpush2.msra.mxu0 0.0
  %878 = vmatprep.subr.mxu0 0.0
  %879 = vmatpush2.msra.mxu0 0.0
  %880 = vmatprep.subr.mxu0 0.0
  %881 = vmatpush2.msra.mxu0 0.0
  %882 = vmatprep.subr.mxu0 0.0
  %883 = vmatpush2.msra.mxu0 0.0
  %884 = vmatprep.subr.mxu0 0.0
  %885 = vmatpush2.msra.mxu0 0.0
  %886 = vmatprep.subr.mxu0 0.0
  %887 = vmatpush2.msra.mxu0 0.0
  %888 = vmatprep.subr.mxu0 0.0
  %889 = vmatpush2.msra.mxu0 0.0
  %890 = vmatprep.mubr.f32.mxu0 0.0
  %891 = vmatmul.mubr.f32.gmra.mxu0 %v824
  %v892 = vpop.f32.mrf.mxu0
  %v893 = vadd.f32 0.0, %v892
  %v894 = vpop.f32.mrf.mxu0
  %895 = vdwg.mxu0
  %v896 = vadd.f32 %v177, %v893
  %v897 = vxor.u32 %v896, 2147483648
  %v898 = vmul.f32 %v897, 1.442695
  %v899 = vpow.pop %v898
  %v900 = vadd.f32 %v899, 1.0
  %v901 = vrcp.pop %v900
  %v902 = vmul.f32 1.0, %v901
  %v903 = vadd.f32 %v893, %v277
  %905 = vrot.lane.b32.xlu0 %v903, 64
  %v906 = vpop.permute.xlu0 %905
  %v908 = vmul.f32 %v902, %v906
  %910 = vrot.lane.b32.xlu0 %v908, 64
  %v911 = vpop.permute.xlu0 %910
  %v913 = vadd.f32 %v177, %v911
  %v914 = vtanh.pop %v913
  %v915 = vsub.f32 1.0, %v902
  %917 = vrot.lane.b32.xlu0 %v914, 96
  %v918 = vpop.permute.xlu0 %917
  %v920 = vmul.f32 %v915, %v918
  %v921 = vmul.f32 %v902, %v818
  %v922 = vadd.f32 %v920, %v921
  %924 = vrot.lane.b32.xlu0 %v922, 96
  %v925 = vpop.permute.xlu0 %924
  %927 = vst.msk [vmem:[#allocation2 + $0x30] sm:$0xff] %vm195, %v925
  %v928 = vsel %vm195, %v925, 0
  %930 = vmatprep.subr.mxu0 0.0
  %931 = vmatpush1.msra.mxu0 0.0
  %932 = vmatprep.subr.mxu0 0.0
  %933 = vmatpush1.msra.mxu0 0.0
  %934 = vmatprep.subr.mxu0 0.0
  %935 = vmatpush1.msra.mxu0 0.0
  %936 = vmatprep.subr.mxu0 0.0
  %937 = vmatpush1.msra.mxu0 0.0
  %938 = vmatprep.subr.mxu0 0.0
  %939 = vmatpush1.msra.mxu0 0.0
  %940 = vmatprep.subr.mxu0 0.0
  %941 = vmatpush1.msra.mxu0 0.0
  %942 = vmatprep.subr.mxu0 0.0
  %943 = vmatpush1.msra.mxu0 0.0
  %944 = vmatprep.subr.mxu0 0.0
  %945 = vmatpush1.msra.mxu0 0.0
  %946 = vmatprep.subr.mxu0 0.0
  %947 = vmatpush1.msra.mxu0 0.0
  %948 = vmatprep.subr.mxu0 0.0
  %949 = vmatpush1.msra.mxu0 0.0
  %950 = vmatprep.subr.mxu0 0.0
  %951 = vmatpush1.msra.mxu0 0.0
  %952 = vmatprep.subr.mxu0 0.0
  %953 = vmatpush1.msra.mxu0 0.0
  %954 = vmatprep.subr.mxu0 0.0
  %955 = vmatpush1.msra.mxu0 %v188
  %956 = vmatprep.subr.mxu0 0.0
  %957 = vmatpush1.msra.mxu0 %v187
  %958 = vmatprep.subr.mxu0 0.0
  %959 = vmatpush1.msra.mxu0 %v186
  %960 = vmatprep.subr.mxu0 0.0
  %961 = vmatpush1.msra.mxu0 %v185
  %962 = vmatprep.subr.mxu0 0.0
  %963 = vmatpush2.msra.mxu0 0.0
  %964 = vmatprep.subr.mxu0 0.0
  %965 = vmatpush2.msra.mxu0 0.0
  %966 = vmatprep.subr.mxu0 0.0
  %967 = vmatpush2.msra.mxu0 0.0
  %968 = vmatprep.subr.mxu0 0.0
  %969 = vmatpush2.msra.mxu0 0.0
  %970 = vmatprep.subr.mxu0 0.0
  %971 = vmatpush2.msra.mxu0 0.0
  %972 = vmatprep.subr.mxu0 0.0
  %973 = vmatpush2.msra.mxu0 0.0
  %974 = vmatprep.subr.mxu0 0.0
  %975 = vmatpush2.msra.mxu0 0.0
  %976 = vmatprep.subr.mxu0 0.0
  %977 = vmatpush2.msra.mxu0 0.0
  %978 = vmatprep.subr.mxu0 0.0
  %979 = vmatpush2.msra.mxu0 0.0
  %980 = vmatprep.subr.mxu0 0.0
  %981 = vmatpush2.msra.mxu0 0.0
  %982 = vmatprep.subr.mxu0 0.0
  %983 = vmatpush2.msra.mxu0 0.0
  %984 = vmatprep.subr.mxu0 0.0
  %985 = vmatpush2.msra.mxu0 0.0
  %986 = vmatprep.subr.mxu0 0.0
  %987 = vmatpush2.msra.mxu0 0.0
  %988 = vmatprep.subr.mxu0 0.0
  %989 = vmatpush2.msra.mxu0 0.0
  %990 = vmatprep.subr.mxu0 0.0
  %991 = vmatpush2.msra.mxu0 0.0
  %992 = vmatprep.subr.mxu0 0.0
  %993 = vmatpush2.msra.mxu0 0.0
  %994 = vmatprep.mubr.f32.mxu0 0.0
  %995 = vmatmul.mubr.f32.gmra.mxu0 %v928
  %v996 = vpop.f32.mrf.mxu0
  %v997 = vadd.f32 0.0, %v996
  %v998 = vpop.f32.mrf.mxu0
  %999 = vdwg.mxu0
  %v1000 = vadd.f32 %v182, %v997
  %v1001 = vxor.u32 %v1000, 2147483648
  %v1002 = vmul.f32 %v1001, 1.442695
  %v1003 = vpow.pop %v1002
  %v1004 = vadd.f32 %v1003, 1.0
  %v1005 = vrcp.pop %v1004
  %v1006 = vmul.f32 1.0, %v1005
  %v1007 = vadd.f32 %v997, %v277
  %1009 = vrot.lane.b32.xlu0 %v1007, 64
  %v1010 = vpop.permute.xlu0 %1009
  %v1012 = vmul.f32 %v1006, %v1010
  %1014 = vrot.lane.b32.xlu0 %v1012, 64
  %v1015 = vpop.permute.xlu0 %1014
  %v1017 = vadd.f32 %v182, %v1015
  %v1018 = vtanh.pop %v1017
  %v1019 = vsub.f32 1.0, %v1006
  %1021 = vrot.lane.b32.xlu0 %v1018, 96
  %v1022 = vpop.permute.xlu0 %1021
  %v1024 = vmul.f32 %v1019, %v1022
  %v1025 = vmul.f32 %v1006, %v922
  %v1026 = vadd.f32 %v1024, %v1025
  %1028 = vrot.lane.b32.xlu0 %v1026, 96
  %v1029 = vpop.permute.xlu0 %1028
  %1031 = vst.msk [vmem:[#allocation2 + $0x38] sm:$0xff] %vm195, %v1029
  %v1032 = vld [vmem:[#allocation2] sm:$0xff]
  %v1033 = vld [vmem:[#allocation2 + $0x8] sm:$0xff]
  %v1034 = vld [vmem:[#allocation2 + $0x10] sm:$0xff]
  %v1035 = vld [vmem:[#allocation2 + $0x18] sm:$0xff]
  %v1036 = vld [vmem:[#allocation2 + $0x20] sm:$0xff]
  %v1037 = vld [vmem:[#allocation2 + $0x28] sm:$0xff]
  %v1038 = vld [vmem:[#allocation2 + $0x30] sm:$0xff]
  %v1039 = vld [vmem:[#allocation2 + $0x38] sm:$0xff]
  %v1040 = vld [vmem:[%s5] sm:$0xff]
  %v1041 = vld [vmem:[%s5 + $0x8] sm:$0xff]
  %v1042 = vld [vmem:[%s5 + $0x10] sm:$0xff]
  %v1043 = vld [vmem:[%s5 + $0x18] sm:$0xff]
  %v1044 = vld [vmem:[%s7] sm:$0x1]
  %v1046 = vlaneseq
  %v1047 = vshrl.u32 %v1046, 7
  %v1048 = vsub.s32 0, %v1047
  %v1049 = vrot.slane %v1044, %v1048
  %v1052 = vsel %vm195, %v1032, 0
  %v1055 = vsel %vm195, %v1033, 0
  %v1058 = vsel %vm195, %v1034, 0
  %v1061 = vsel %vm195, %v1035, 0
  %v1064 = vsel %vm195, %v1036, 0
  %v1067 = vsel %vm195, %v1037, 0
  %v1070 = vsel %vm195, %v1038, 0
  %v1073 = vsel %vm195, %v1039, 0
  %1075 = vmatprep.subr.mxu0 0.0
  %1076 = vmatpush1.msra.mxu0 0.0
  %1077 = vmatprep.subr.mxu0 0.0
  %1078 = vmatpush1.msra.mxu0 0.0
  %1079 = vmatprep.subr.mxu0 0.0
  %1080 = vmatpush1.msra.mxu0 0.0
  %1081 = vmatprep.subr.mxu0 0.0
  %1082 = vmatpush1.msra.mxu0 0.0
  %1083 = vmatprep.subr.mxu0 0.0
  %1084 = vmatpush1.msra.mxu0 0.0
  %1085 = vmatprep.subr.mxu0 0.0
  %1086 = vmatpush1.msra.mxu0 0.0
  %1087 = vmatprep.subr.mxu0 0.0
  %1088 = vmatpush1.msra.mxu0 0.0
  %1089 = vmatprep.subr.mxu0 0.0
  %1090 = vmatpush1.msra.mxu0 0.0
  %1091 = vmatprep.subr.mxu0 0.0
  %1092 = vmatpush1.msra.mxu0 0.0
  %1093 = vmatprep.subr.mxu0 0.0
  %1094 = vmatpush1.msra.mxu0 0.0
  %1095 = vmatprep.subr.mxu0 0.0
  %1096 = vmatpush1.msra.mxu0 0.0
  %1097 = vmatprep.subr.mxu0 0.0
  %1098 = vmatpush1.msra.mxu0 0.0
  %1099 = vmatprep.subr.mxu0 0.0
  %1100 = vmatpush1.msra.mxu0 %v1043
  %1101 = vmatprep.subr.mxu0 0.0
  %1102 = vmatpush1.msra.mxu0 %v1042
  %1103 = vmatprep.subr.mxu0 0.0
  %1104 = vmatpush1.msra.mxu0 %v1041
  %1105 = vmatprep.subr.mxu0 0.0
  %1106 = vmatpush1.msra.mxu0 %v1040
  %1107 = vmatprep.subr.mxu0 0.0
  %1108 = vmatpush2.msra.mxu0 0.0
  %1109 = vmatprep.subr.mxu0 0.0
  %1110 = vmatpush2.msra.mxu0 0.0
  %1111 = vmatprep.subr.mxu0 0.0
  %1112 = vmatpush2.msra.mxu0 0.0
  %1113 = vmatprep.subr.mxu0 0.0
  %1114 = vmatpush2.msra.mxu0 0.0
  %1115 = vmatprep.subr.mxu0 0.0
  %1116 = vmatpush2.msra.mxu0 0.0
  %1117 = vmatprep.subr.mxu0 0.0
  %1118 = vmatpush2.msra.mxu0 0.0
  %1119 = vmatprep.subr.mxu0 0.0
  %1120 = vmatpush2.msra.mxu0 0.0
  %1121 = vmatprep.subr.mxu0 0.0
  %1122 = vmatpush2.msra.mxu0 0.0
  %1123 = vmatprep.subr.mxu0 0.0
  %1124 = vmatpush2.msra.mxu0 0.0
  %1125 = vmatprep.subr.mxu0 0.0
  %1126 = vmatpush2.msra.mxu0 0.0
  %1127 = vmatprep.subr.mxu0 0.0
  %1128 = vmatpush2.msra.mxu0 0.0
  %1129 = vmatprep.subr.mxu0 0.0
  %1130 = vmatpush2.msra.mxu0 0.0
  %1131 = vmatprep.subr.mxu0 0.0
  %1132 = vmatpush2.msra.mxu0 0.0
  %1133 = vmatprep.subr.mxu0 0.0
  %1134 = vmatpush2.msra.mxu0 0.0
  %1135 = vmatprep.subr.mxu0 0.0
  %1136 = vmatpush2.msra.mxu0 0.0
  %1137 = vmatprep.subr.mxu0 0.0
  %1138 = vmatpush2.msra.mxu0 0.0
  %1139 = vmatprep.mubr.f32.mxu0 0.0
  %1140 = vmatmul.mubr.f32.gmra.mxu0 %v1052
  %v1141 = vpop.f32.mrf.mxu0
  %v1142 = vadd.f32 %v1049, %v1141
  %v1143 = vpop.f32.mrf.mxu0
  %1144 = vmatprep.mubr.f32.mxu0 0.0
  %1145 = vmatmul.mubr.f32.gmra.mxu0 %v1055
  %v1146 = vpop.f32.mrf.mxu0
  %v1147 = vadd.f32 %v1049, %v1146
  %v1148 = vpop.f32.mrf.mxu0
  %1149 = vmatprep.mubr.f32.mxu0 0.0
  %1150 = vmatmul.mubr.f32.gmra.mxu0 %v1058
  %v1151 = vpop.f32.mrf.mxu0
  %v1152 = vadd.f32 %v1049, %v1151
  %v1153 = vpop.f32.mrf.mxu0
  %1154 = vmatprep.mubr.f32.mxu0 0.0
  %1155 = vmatmul.mubr.f32.gmra.mxu0 %v1061
  %v1156 = vpop.f32.mrf.mxu0
  %v1157 = vadd.f32 %v1049, %v1156
  %v1158 = vpop.f32.mrf.mxu0
  %1159 = vmatprep.mubr.f32.mxu0 0.0
  %1160 = vmatmul.mubr.f32.gmra.mxu0 %v1064
  %v1161 = vpop.f32.mrf.mxu0
  %v1162 = vadd.f32 %v1049, %v1161
  %v1163 = vpop.f32.mrf.mxu0
  %1164 = vmatprep.mubr.f32.mxu0 0.0
  %1165 = vmatmul.mubr.f32.gmra.mxu0 %v1067
  %v1166 = vpop.f32.mrf.mxu0
  %v1167 = vadd.f32 %v1049, %v1166
  %v1168 = vpop.f32.mrf.mxu0
  %1169 = vmatprep.mubr.f32.mxu0 0.0
  %1170 = vmatmul.mubr.f32.gmra.mxu0 %v1070
  %v1171 = vpop.f32.mrf.mxu0
  %v1172 = vadd.f32 %v1049, %v1171
  %v1173 = vpop.f32.mrf.mxu0
  %1174 = vmatprep.mubr.f32.mxu0 0.0
  %1175 = vmatmul.mubr.f32.gmra.mxu0 %v1073
  %v1176 = vpop.f32.mrf.mxu0
  %v1177 = vadd.f32 %v1049, %v1176
  %v1178 = vpop.f32.mrf.mxu0
  %1179 = vdwg.mxu0
  %v1180 = vld [vmem:[%s6] sm:$0xff]
  %v1181 = vld [vmem:[%s6 + $0x8] sm:$0xff]
  %v1182 = vld [vmem:[%s6 + $0x10] sm:$0xff]
  %v1183 = vld [vmem:[%s6 + $0x18] sm:$0xff]
  %v1184 = vld [vmem:[%s8] sm:$0x1]
  %v1186 = vlaneseq
  %v1187 = vshrl.u32 %v1186, 7
  %v1188 = vsub.s32 0, %v1187
  %v1189 = vrot.slane %v1184, %v1188
  %1190 = vmatprep.subr.mxu0 0.0
  %1191 = vmatpush1.msra.mxu0 0.0
  %1192 = vmatprep.subr.mxu0 0.0
  %1193 = vmatpush1.msra.mxu0 0.0
  %1194 = vmatprep.subr.mxu0 0.0
  %1195 = vmatpush1.msra.mxu0 0.0
  %1196 = vmatprep.subr.mxu0 0.0
  %1197 = vmatpush1.msra.mxu0 0.0
  %1198 = vmatprep.subr.mxu0 0.0
  %1199 = vmatpush1.msra.mxu0 0.0
  %1200 = vmatprep.subr.mxu0 0.0
  %1201 = vmatpush1.msra.mxu0 0.0
  %1202 = vmatprep.subr.mxu0 0.0
  %1203 = vmatpush1.msra.mxu0 0.0
  %1204 = vmatprep.subr.mxu0 0.0
  %1205 = vmatpush1.msra.mxu0 0.0
  %1206 = vmatprep.subr.mxu0 0.0
  %1207 = vmatpush1.msra.mxu0 0.0
  %1208 = vmatprep.subr.mxu0 0.0
  %1209 = vmatpush1.msra.mxu0 0.0
  %1210 = vmatprep.subr.mxu0 0.0
  %1211 = vmatpush1.msra.mxu0 0.0
  %1212 = vmatprep.subr.mxu0 0.0
  %1213 = vmatpush1.msra.mxu0 0.0
  %1214 = vmatprep.subr.mxu0 0.0
  %1215 = vmatpush1.msra.mxu0 %v1183
  %1216 = vmatprep.subr.mxu0 0.0
  %1217 = vmatpush1.msra.mxu0 %v1182
  %1218 = vmatprep.subr.mxu0 0.0
  %1219 = vmatpush1.msra.mxu0 %v1181
  %1220 = vmatprep.subr.mxu0 0.0
  %1221 = vmatpush1.msra.mxu0 %v1180
  %1222 = vmatprep.subr.mxu0 0.0
  %1223 = vmatpush2.msra.mxu0 0.0
  %1224 = vmatprep.subr.mxu0 0.0
  %1225 = vmatpush2.msra.mxu0 0.0
  %1226 = vmatprep.subr.mxu0 0.0
  %1227 = vmatpush2.msra.mxu0 0.0
  %1228 = vmatprep.subr.mxu0 0.0
  %1229 = vmatpush2.msra.mxu0 0.0
  %1230 = vmatprep.subr.mxu0 0.0
  %1231 = vmatpush2.msra.mxu0 0.0
  %1232 = vmatprep.subr.mxu0 0.0
  %1233 = vmatpush2.msra.mxu0 0.0
  %1234 = vmatprep.subr.mxu0 0.0
  %1235 = vmatpush2.msra.mxu0 0.0
  %1236 = vmatprep.subr.mxu0 0.0
  %1237 = vmatpush2.msra.mxu0 0.0
  %1238 = vmatprep.subr.mxu0 0.0
  %1239 = vmatpush2.msra.mxu0 0.0
  %1240 = vmatprep.subr.mxu0 0.0
  %1241 = vmatpush2.msra.mxu0 0.0
  %1242 = vmatprep.subr.mxu0 0.0
  %1243 = vmatpush2.msra.mxu0 0.0
  %1244 = vmatprep.subr.mxu0 0.0
  %1245 = vmatpush2.msra.mxu0 0.0
  %1246 = vmatprep.subr.mxu0 0.0
  %1247 = vmatpush2.msra.mxu0 0.0
  %1248 = vmatprep.subr.mxu0 0.0
  %1249 = vmatpush2.msra.mxu0 0.0
  %1250 = vmatprep.subr.mxu0 0.0
  %1251 = vmatpush2.msra.mxu0 0.0
  %1252 = vmatprep.subr.mxu0 0.0
  %1253 = vmatpush2.msra.mxu0 0.0
  %1254 = vmatprep.mubr.f32.mxu0 0.0
  %1255 = vmatmul.mubr.f32.gmra.mxu0 %v197
  %v1256 = vpop.f32.mrf.mxu0
  %v1257 = vadd.f32 0.0, %v1256
  %v1258 = vpop.f32.mrf.mxu0
  %1259 = vdwg.mxu0
  %v1260 = vadd.f32 %v1142, %v1257
  %v1261 = vxor.u32 %v1260, 2147483648
  %v1262 = vmul.f32 %v1261, 1.442695
  %v1263 = vpow.pop %v1262
  %v1264 = vadd.f32 %v1263, 1.0
  %v1265 = vrcp.pop %v1264
  %v1266 = vmul.f32 1.0, %v1265
  %1267 = vrot.lane.b32.xlu0 %v1189, 64
  %v1268 = vpop.permute.xlu0 %1267
  %v1270 = vadd.f32 %v1257, %v1268
  %1272 = vrot.lane.b32.xlu0 %v1270, 64
  %v1273 = vpop.permute.xlu0 %1272
  %v1275 = vmul.f32 %v1266, %v1273
  %1277 = vrot.lane.b32.xlu0 %v1275, 64
  %v1278 = vpop.permute.xlu0 %1277
  %v1280 = vadd.f32 %v1142, %v1278
  %v1281 = vtanh.pop %v1280
  %v1282 = vsub.f32 1.0, %v1266
  %1284 = vrot.lane.b32.xlu0 %v1281, 96
  %v1285 = vpop.permute.xlu0 %1284
  %v1287 = vmul.f32 %v1282, %v1285
  %v1288 = vmul.f32 %v1266, 0.0
  %v1289 = vadd.f32 %v1287, %v1288
  %1291 = vrot.lane.b32.xlu0 %v1289, 96
  %v1292 = vpop.permute.xlu0 %1291
  %v1293 = vsel %vm195, %v1292, 0
  %1295 = vmatprep.subr.mxu0 0.0
  %1296 = vmatpush1.msra.mxu0 0.0
  %1297 = vmatprep.subr.mxu0 0.0
  %1298 = vmatpush1.msra.mxu0 0.0
  %1299 = vmatprep.subr.mxu0 0.0
  %1300 = vmatpush1.msra.mxu0 0.0
  %1301 = vmatprep.subr.mxu0 0.0
  %1302 = vmatpush1.msra.mxu0 0.0
  %1303 = vmatprep.subr.mxu0 0.0
  %1304 = vmatpush1.msra.mxu0 0.0
  %1305 = vmatprep.subr.mxu0 0.0
  %1306 = vmatpush1.msra.mxu0 0.0
  %1307 = vmatprep.subr.mxu0 0.0
  %1308 = vmatpush1.msra.mxu0 0.0
  %1309 = vmatprep.subr.mxu0 0.0
  %1310 = vmatpush1.msra.mxu0 0.0
  %1311 = vmatprep.subr.mxu0 0.0
  %1312 = vmatpush1.msra.mxu0 0.0
  %1313 = vmatprep.subr.mxu0 0.0
  %1314 = vmatpush1.msra.mxu0 0.0
  %1315 = vmatprep.subr.mxu0 0.0
  %1316 = vmatpush1.msra.mxu0 0.0
  %1317 = vmatprep.subr.mxu0 0.0
  %1318 = vmatpush1.msra.mxu0 0.0
  %1319 = vmatprep.subr.mxu0 0.0
  %1320 = vmatpush1.msra.mxu0 %v1183
  %1321 = vmatprep.subr.mxu0 0.0
  %1322 = vmatpush1.msra.mxu0 %v1182
  %1323 = vmatprep.subr.mxu0 0.0
  %1324 = vmatpush1.msra.mxu0 %v1181
  %1325 = vmatprep.subr.mxu0 0.0
  %1326 = vmatpush1.msra.mxu0 %v1180
  %1327 = vmatprep.subr.mxu0 0.0
  %1328 = vmatpush2.msra.mxu0 0.0
  %1329 = vmatprep.subr.mxu0 0.0
  %1330 = vmatpush2.msra.mxu0 0.0
  %1331 = vmatprep.subr.mxu0 0.0
  %1332 = vmatpush2.msra.mxu0 0.0
  %1333 = vmatprep.subr.mxu0 0.0
  %1334 = vmatpush2.msra.mxu0 0.0
  %1335 = vmatprep.subr.mxu0 0.0
  %1336 = vmatpush2.msra.mxu0 0.0
  %1337 = vmatprep.subr.mxu0 0.0
  %1338 = vmatpush2.msra.mxu0 0.0
  %1339 = vmatprep.subr.mxu0 0.0
  %1340 = vmatpush2.msra.mxu0 0.0
  %1341 = vmatprep.subr.mxu0 0.0
  %1342 = vmatpush2.msra.mxu0 0.0
  %1343 = vmatprep.subr.mxu0 0.0
  %1344 = vmatpush2.msra.mxu0 0.0
  %1345 = vmatprep.subr.mxu0 0.0
  %1346 = vmatpush2.msra.mxu0 0.0
  %1347 = vmatprep.subr.mxu0 0.0
  %1348 = vmatpush2.msra.mxu0 0.0
  %1349 = vmatprep.subr.mxu0 0.0
  %1350 = vmatpush2.msra.mxu0 0.0
  %1351 = vmatprep.subr.mxu0 0.0
  %1352 = vmatpush2.msra.mxu0 0.0
  %1353 = vmatprep.subr.mxu0 0.0
  %1354 = vmatpush2.msra.mxu0 0.0
  %1355 = vmatprep.subr.mxu0 0.0
  %1356 = vmatpush2.msra.mxu0 0.0
  %1357 = vmatprep.subr.mxu0 0.0
  %1358 = vmatpush2.msra.mxu0 0.0
  %1359 = vmatprep.mubr.f32.mxu0 0.0
  %1360 = vmatmul.mubr.f32.gmra.mxu0 %v1293
  %v1361 = vpop.f32.mrf.mxu0
  %v1362 = vadd.f32 0.0, %v1361
  %v1363 = vpop.f32.mrf.mxu0
  %1364 = vdwg.mxu0
  %v1365 = vadd.f32 %v1147, %v1362
  %v1366 = vxor.u32 %v1365, 2147483648
  %v1367 = vmul.f32 %v1366, 1.442695
  %v1368 = vpow.pop %v1367
  %v1369 = vadd.f32 %v1368, 1.0
  %v1370 = vrcp.pop %v1369
  %v1371 = vmul.f32 1.0, %v1370
  %v1372 = vadd.f32 %v1362, %v1268
  %1374 = vrot.lane.b32.xlu0 %v1372, 64
  %v1375 = vpop.permute.xlu0 %1374
  %v1377 = vmul.f32 %v1371, %v1375
  %1379 = vrot.lane.b32.xlu0 %v1377, 64
  %v1380 = vpop.permute.xlu0 %1379
  %v1382 = vadd.f32 %v1147, %v1380
  %v1383 = vtanh.pop %v1382
  %v1384 = vsub.f32 1.0, %v1371
  %1386 = vrot.lane.b32.xlu0 %v1383, 96
  %v1387 = vpop.permute.xlu0 %1386
  %v1389 = vmul.f32 %v1384, %v1387
  %v1390 = vmul.f32 %v1371, %v1289
  %v1391 = vadd.f32 %v1389, %v1390
  %1393 = vrot.lane.b32.xlu0 %v1391, 96
  %v1394 = vpop.permute.xlu0 %1393
  %v1395 = vsel %vm195, %v1394, 0
  %1397 = vmatprep.subr.mxu0 0.0
  %1398 = vmatpush1.msra.mxu0 0.0
  %1399 = vmatprep.subr.mxu0 0.0
  %1400 = vmatpush1.msra.mxu0 0.0
  %1401 = vmatprep.subr.mxu0 0.0
  %1402 = vmatpush1.msra.mxu0 0.0
  %1403 = vmatprep.subr.mxu0 0.0
  %1404 = vmatpush1.msra.mxu0 0.0
  %1405 = vmatprep.subr.mxu0 0.0
  %1406 = vmatpush1.msra.mxu0 0.0
  %1407 = vmatprep.subr.mxu0 0.0
  %1408 = vmatpush1.msra.mxu0 0.0
  %1409 = vmatprep.subr.mxu0 0.0
  %1410 = vmatpush1.msra.mxu0 0.0
  %1411 = vmatprep.subr.mxu0 0.0
  %1412 = vmatpush1.msra.mxu0 0.0
  %1413 = vmatprep.subr.mxu0 0.0
  %1414 = vmatpush1.msra.mxu0 0.0
  %1415 = vmatprep.subr.mxu0 0.0
  %1416 = vmatpush1.msra.mxu0 0.0
  %1417 = vmatprep.subr.mxu0 0.0
  %1418 = vmatpush1.msra.mxu0 0.0
  %1419 = vmatprep.subr.mxu0 0.0
  %1420 = vmatpush1.msra.mxu0 0.0
  %1421 = vmatprep.subr.mxu0 0.0
  %1422 = vmatpush1.msra.mxu0 %v1183
  %1423 = vmatprep.subr.mxu0 0.0
  %1424 = vmatpush1.msra.mxu0 %v1182
  %1425 = vmatprep.subr.mxu0 0.0
  %1426 = vmatpush1.msra.mxu0 %v1181
  %1427 = vmatprep.subr.mxu0 0.0
  %1428 = vmatpush1.msra.mxu0 %v1180
  %1429 = vmatprep.subr.mxu0 0.0
  %1430 = vmatpush2.msra.mxu0 0.0
  %1431 = vmatprep.subr.mxu0 0.0
  %1432 = vmatpush2.msra.mxu0 0.0
  %1433 = vmatprep.subr.mxu0 0.0
  %1434 = vmatpush2.msra.mxu0 0.0
  %1435 = vmatprep.subr.mxu0 0.0
  %1436 = vmatpush2.msra.mxu0 0.0
  %1437 = vmatprep.subr.mxu0 0.0
  %1438 = vmatpush2.msra.mxu0 0.0
  %1439 = vmatprep.subr.mxu0 0.0
  %1440 = vmatpush2.msra.mxu0 0.0
  %1441 = vmatprep.subr.mxu0 0.0
  %1442 = vmatpush2.msra.mxu0 0.0
  %1443 = vmatprep.subr.mxu0 0.0
  %1444 = vmatpush2.msra.mxu0 0.0
  %1445 = vmatprep.subr.mxu0 0.0
  %1446 = vmatpush2.msra.mxu0 0.0
  %1447 = vmatprep.subr.mxu0 0.0
  %1448 = vmatpush2.msra.mxu0 0.0
  %1449 = vmatprep.subr.mxu0 0.0
  %1450 = vmatpush2.msra.mxu0 0.0
  %1451 = vmatprep.subr.mxu0 0.0
  %1452 = vmatpush2.msra.mxu0 0.0
  %1453 = vmatprep.subr.mxu0 0.0
  %1454 = vmatpush2.msra.mxu0 0.0
  %1455 = vmatprep.subr.mxu0 0.0
  %1456 = vmatpush2.msra.mxu0 0.0
  %1457 = vmatprep.subr.mxu0 0.0
  %1458 = vmatpush2.msra.mxu0 0.0
  %1459 = vmatprep.subr.mxu0 0.0
  %1460 = vmatpush2.msra.mxu0 0.0
  %1461 = vmatprep.mubr.f32.mxu0 0.0
  %1462 = vmatmul.mubr.f32.gmra.mxu0 %v1395
  %v1463 = vpop.f32.mrf.mxu0
  %v1464 = vadd.f32 0.0, %v1463
  %v1465 = vpop.f32.mrf.mxu0
  %1466 = vdwg.mxu0
  %v1467 = vadd.f32 %v1152, %v1464
  %v1468 = vxor.u32 %v1467, 2147483648
  %v1469 = vmul.f32 %v1468, 1.442695
  %v1470 = vpow.pop %v1469
  %v1471 = vadd.f32 %v1470, 1.0
  %v1472 = vrcp.pop %v1471
  %v1473 = vmul.f32 1.0, %v1472
  %v1474 = vadd.f32 %v1464, %v1268
  %1476 = vrot.lane.b32.xlu0 %v1474, 64
  %v1477 = vpop.permute.xlu0 %1476
  %v1479 = vmul.f32 %v1473, %v1477
  %1481 = vrot.lane.b32.xlu0 %v1479, 64
  %v1482 = vpop.permute.xlu0 %1481
  %v1484 = vadd.f32 %v1152, %v1482
  %v1485 = vtanh.pop %v1484
  %v1486 = vsub.f32 1.0, %v1473
  %1488 = vrot.lane.b32.xlu0 %v1485, 96
  %v1489 = vpop.permute.xlu0 %1488
  %v1491 = vmul.f32 %v1486, %v1489
  %v1492 = vmul.f32 %v1473, %v1391
  %v1493 = vadd.f32 %v1491, %v1492
  %1495 = vrot.lane.b32.xlu0 %v1493, 96
  %v1496 = vpop.permute.xlu0 %1495
  %v1497 = vsel %vm195, %v1496, 0
  %1499 = vmatprep.subr.mxu0 0.0
  %1500 = vmatpush1.msra.mxu0 0.0
  %1501 = vmatprep.subr.mxu0 0.0
  %1502 = vmatpush1.msra.mxu0 0.0
  %1503 = vmatprep.subr.mxu0 0.0
  %1504 = vmatpush1.msra.mxu0 0.0
  %1505 = vmatprep.subr.mxu0 0.0
  %1506 = vmatpush1.msra.mxu0 0.0
  %1507 = vmatprep.subr.mxu0 0.0
  %1508 = vmatpush1.msra.mxu0 0.0
  %1509 = vmatprep.subr.mxu0 0.0
  %1510 = vmatpush1.msra.mxu0 0.0
  %1511 = vmatprep.subr.mxu0 0.0
  %1512 = vmatpush1.msra.mxu0 0.0
  %1513 = vmatprep.subr.mxu0 0.0
  %1514 = vmatpush1.msra.mxu0 0.0
  %1515 = vmatprep.subr.mxu0 0.0
  %1516 = vmatpush1.msra.mxu0 0.0
  %1517 = vmatprep.subr.mxu0 0.0
  %1518 = vmatpush1.msra.mxu0 0.0
  %1519 = vmatprep.subr.mxu0 0.0
  %1520 = vmatpush1.msra.mxu0 0.0
  %1521 = vmatprep.subr.mxu0 0.0
  %1522 = vmatpush1.msra.mxu0 0.0
  %1523 = vmatprep.subr.mxu0 0.0
  %1524 = vmatpush1.msra.mxu0 %v1183
  %1525 = vmatprep.subr.mxu0 0.0
  %1526 = vmatpush1.msra.mxu0 %v1182
  %1527 = vmatprep.subr.mxu0 0.0
  %1528 = vmatpush1.msra.mxu0 %v1181
  %1529 = vmatprep.subr.mxu0 0.0
  %1530 = vmatpush1.msra.mxu0 %v1180
  %1531 = vmatprep.subr.mxu0 0.0
  %1532 = vmatpush2.msra.mxu0 0.0
  %1533 = vmatprep.subr.mxu0 0.0
  %1534 = vmatpush2.msra.mxu0 0.0
  %1535 = vmatprep.subr.mxu0 0.0
  %1536 = vmatpush2.msra.mxu0 0.0
  %1537 = vmatprep.subr.mxu0 0.0
  %1538 = vmatpush2.msra.mxu0 0.0
  %1539 = vmatprep.subr.mxu0 0.0
  %1540 = vmatpush2.msra.mxu0 0.0
  %1541 = vmatprep.subr.mxu0 0.0
  %1542 = vmatpush2.msra.mxu0 0.0
  %1543 = vmatprep.subr.mxu0 0.0
  %1544 = vmatpush2.msra.mxu0 0.0
  %1545 = vmatprep.subr.mxu0 0.0
  %1546 = vmatpush2.msra.mxu0 0.0
  %1547 = vmatprep.subr.mxu0 0.0
  %1548 = vmatpush2.msra.mxu0 0.0
  %1549 = vmatprep.subr.mxu0 0.0
  %1550 = vmatpush2.msra.mxu0 0.0
  %1551 = vmatprep.subr.mxu0 0.0
  %1552 = vmatpush2.msra.mxu0 0.0
  %1553 = vmatprep.subr.mxu0 0.0
  %1554 = vmatpush2.msra.mxu0 0.0
  %1555 = vmatprep.subr.mxu0 0.0
  %1556 = vmatpush2.msra.mxu0 0.0
  %1557 = vmatprep.subr.mxu0 0.0
  %1558 = vmatpush2.msra.mxu0 0.0
  %1559 = vmatprep.subr.mxu0 0.0
  %1560 = vmatpush2.msra.mxu0 0.0
  %1561 = vmatprep.subr.mxu0 0.0
  %1562 = vmatpush2.msra.mxu0 0.0
  %1563 = vmatprep.mubr.f32.mxu0 0.0
  %1564 = vmatmul.mubr.f32.gmra.mxu0 %v1497
  %v1565 = vpop.f32.mrf.mxu0
  %v1566 = vadd.f32 0.0, %v1565
  %v1567 = vpop.f32.mrf.mxu0
  %1568 = vdwg.mxu0
  %v1569 = vadd.f32 %v1157, %v1566
  %v1570 = vxor.u32 %v1569, 2147483648
  %v1571 = vmul.f32 %v1570, 1.442695
  %v1572 = vpow.pop %v1571
  %v1573 = vadd.f32 %v1572, 1.0
  %v1574 = vrcp.pop %v1573
  %v1575 = vmul.f32 1.0, %v1574
  %v1576 = vadd.f32 %v1566, %v1268
  %1578 = vrot.lane.b32.xlu0 %v1576, 64
  %v1579 = vpop.permute.xlu0 %1578
  %v1581 = vmul.f32 %v1575, %v1579
  %1583 = vrot.lane.b32.xlu0 %v1581, 64
  %v1584 = vpop.permute.xlu0 %1583
  %v1586 = vadd.f32 %v1157, %v1584
  %v1587 = vtanh.pop %v1586
  %v1588 = vsub.f32 1.0, %v1575
  %1590 = vrot.lane.b32.xlu0 %v1587, 96
  %v1591 = vpop.permute.xlu0 %1590
  %v1593 = vmul.f32 %v1588, %v1591
  %v1594 = vmul.f32 %v1575, %v1493
  %v1595 = vadd.f32 %v1593, %v1594
  %1597 = vrot.lane.b32.xlu0 %v1595, 96
  %v1598 = vpop.permute.xlu0 %1597
  %v1599 = vsel %vm195, %v1598, 0
  %1601 = vmatprep.subr.mxu0 0.0
  %1602 = vmatpush1.msra.mxu0 0.0
  %1603 = vmatprep.subr.mxu0 0.0
  %1604 = vmatpush1.msra.mxu0 0.0
  %1605 = vmatprep.subr.mxu0 0.0
  %1606 = vmatpush1.msra.mxu0 0.0
  %1607 = vmatprep.subr.mxu0 0.0
  %1608 = vmatpush1.msra.mxu0 0.0
  %1609 = vmatprep.subr.mxu0 0.0
  %1610 = vmatpush1.msra.mxu0 0.0
  %1611 = vmatprep.subr.mxu0 0.0
  %1612 = vmatpush1.msra.mxu0 0.0
  %1613 = vmatprep.subr.mxu0 0.0
  %1614 = vmatpush1.msra.mxu0 0.0
  %1615 = vmatprep.subr.mxu0 0.0
  %1616 = vmatpush1.msra.mxu0 0.0
  %1617 = vmatprep.subr.mxu0 0.0
  %1618 = vmatpush1.msra.mxu0 0.0
  %1619 = vmatprep.subr.mxu0 0.0
  %1620 = vmatpush1.msra.mxu0 0.0
  %1621 = vmatprep.subr.mxu0 0.0
  %1622 = vmatpush1.msra.mxu0 0.0
  %1623 = vmatprep.subr.mxu0 0.0
  %1624 = vmatpush1.msra.mxu0 0.0
  %1625 = vmatprep.subr.mxu0 0.0
  %1626 = vmatpush1.msra.mxu0 %v1183
  %1627 = vmatprep.subr.mxu0 0.0
  %1628 = vmatpush1.msra.mxu0 %v1182
  %1629 = vmatprep.subr.mxu0 0.0
  %1630 = vmatpush1.msra.mxu0 %v1181
  %1631 = vmatprep.subr.mxu0 0.0
  %1632 = vmatpush1.msra.mxu0 %v1180
  %1633 = vmatprep.subr.mxu0 0.0
  %1634 = vmatpush2.msra.mxu0 0.0
  %1635 = vmatprep.subr.mxu0 0.0
  %1636 = vmatpush2.msra.mxu0 0.0
  %1637 = vmatprep.subr.mxu0 0.0
  %1638 = vmatpush2.msra.mxu0 0.0
  %1639 = vmatprep.subr.mxu0 0.0
  %1640 = vmatpush2.msra.mxu0 0.0
  %1641 = vmatprep.subr.mxu0 0.0
  %1642 = vmatpush2.msra.mxu0 0.0
  %1643 = vmatprep.subr.mxu0 0.0
  %1644 = vmatpush2.msra.mxu0 0.0
  %1645 = vmatprep.subr.mxu0 0.0
  %1646 = vmatpush2.msra.mxu0 0.0
  %1647 = vmatprep.subr.mxu0 0.0
  %1648 = vmatpush2.msra.mxu0 0.0
  %1649 = vmatprep.subr.mxu0 0.0
  %1650 = vmatpush2.msra.mxu0 0.0
  %1651 = vmatprep.subr.mxu0 0.0
  %1652 = vmatpush2.msra.mxu0 0.0
  %1653 = vmatprep.subr.mxu0 0.0
  %1654 = vmatpush2.msra.mxu0 0.0
  %1655 = vmatprep.subr.mxu0 0.0
  %1656 = vmatpush2.msra.mxu0 0.0
  %1657 = vmatprep.subr.mxu0 0.0
  %1658 = vmatpush2.msra.mxu0 0.0
  %1659 = vmatprep.subr.mxu0 0.0
  %1660 = vmatpush2.msra.mxu0 0.0
  %1661 = vmatprep.subr.mxu0 0.0
  %1662 = vmatpush2.msra.mxu0 0.0
  %1663 = vmatprep.subr.mxu0 0.0
  %1664 = vmatpush2.msra.mxu0 0.0
  %1665 = vmatprep.mubr.f32.mxu0 0.0
  %1666 = vmatmul.mubr.f32.gmra.mxu0 %v1599
  %v1667 = vpop.f32.mrf.mxu0
  %v1668 = vadd.f32 0.0, %v1667
  %v1669 = vpop.f32.mrf.mxu0
  %1670 = vdwg.mxu0
  %v1671 = vadd.f32 %v1162, %v1668
  %v1672 = vxor.u32 %v1671, 2147483648
  %v1673 = vmul.f32 %v1672, 1.442695
  %v1674 = vpow.pop %v1673
  %v1675 = vadd.f32 %v1674, 1.0
  %v1676 = vrcp.pop %v1675
  %v1677 = vmul.f32 1.0, %v1676
  %v1678 = vadd.f32 %v1668, %v1268
  %1680 = vrot.lane.b32.xlu0 %v1678, 64
  %v1681 = vpop.permute.xlu0 %1680
  %v1683 = vmul.f32 %v1677, %v1681
  %1685 = vrot.lane.b32.xlu0 %v1683, 64
  %v1686 = vpop.permute.xlu0 %1685
  %v1688 = vadd.f32 %v1162, %v1686
  %v1689 = vtanh.pop %v1688
  %v1690 = vsub.f32 1.0, %v1677
  %1692 = vrot.lane.b32.xlu0 %v1689, 96
  %v1693 = vpop.permute.xlu0 %1692
  %v1695 = vmul.f32 %v1690, %v1693
  %v1696 = vmul.f32 %v1677, %v1595
  %v1697 = vadd.f32 %v1695, %v1696
  %1699 = vrot.lane.b32.xlu0 %v1697, 96
  %v1700 = vpop.permute.xlu0 %1699
  %v1701 = vsel %vm195, %v1700, 0
  %1703 = vmatprep.subr.mxu0 0.0
  %1704 = vmatpush1.msra.mxu0 0.0
  %1705 = vmatprep.subr.mxu0 0.0
  %1706 = vmatpush1.msra.mxu0 0.0
  %1707 = vmatprep.subr.mxu0 0.0
  %1708 = vmatpush1.msra.mxu0 0.0
  %1709 = vmatprep.subr.mxu0 0.0
  %1710 = vmatpush1.msra.mxu0 0.0
  %1711 = vmatprep.subr.mxu0 0.0
  %1712 = vmatpush1.msra.mxu0 0.0
  %1713 = vmatprep.subr.mxu0 0.0
  %1714 = vmatpush1.msra.mxu0 0.0
  %1715 = vmatprep.subr.mxu0 0.0
  %1716 = vmatpush1.msra.mxu0 0.0
  %1717 = vmatprep.subr.mxu0 0.0
  %1718 = vmatpush1.msra.mxu0 0.0
  %1719 = vmatprep.subr.mxu0 0.0
  %1720 = vmatpush1.msra.mxu0 0.0
  %1721 = vmatprep.subr.mxu0 0.0
  %1722 = vmatpush1.msra.mxu0 0.0
  %1723 = vmatprep.subr.mxu0 0.0
  %1724 = vmatpush1.msra.mxu0 0.0
  %1725 = vmatprep.subr.mxu0 0.0
  %1726 = vmatpush1.msra.mxu0 0.0
  %1727 = vmatprep.subr.mxu0 0.0
  %1728 = vmatpush1.msra.mxu0 %v1183
  %1729 = vmatprep.subr.mxu0 0.0
  %1730 = vmatpush1.msra.mxu0 %v1182
  %1731 = vmatprep.subr.mxu0 0.0
  %1732 = vmatpush1.msra.mxu0 %v1181
  %1733 = vmatprep.subr.mxu0 0.0
  %1734 = vmatpush1.msra.mxu0 %v1180
  %1735 = vmatprep.subr.mxu0 0.0
  %1736 = vmatpush2.msra.mxu0 0.0
  %1737 = vmatprep.subr.mxu0 0.0
  %1738 = vmatpush2.msra.mxu0 0.0
  %1739 = vmatprep.subr.mxu0 0.0
  %1740 = vmatpush2.msra.mxu0 0.0
  %1741 = vmatprep.subr.mxu0 0.0
  %1742 = vmatpush2.msra.mxu0 0.0
  %1743 = vmatprep.subr.mxu0 0.0
  %1744 = vmatpush2.msra.mxu0 0.0
  %1745 = vmatprep.subr.mxu0 0.0
  %1746 = vmatpush2.msra.mxu0 0.0
  %1747 = vmatprep.subr.mxu0 0.0
  %1748 = vmatpush2.msra.mxu0 0.0
  %1749 = vmatprep.subr.mxu0 0.0
  %1750 = vmatpush2.msra.mxu0 0.0
  %1751 = vmatprep.subr.mxu0 0.0
  %1752 = vmatpush2.msra.mxu0 0.0
  %1753 = vmatprep.subr.mxu0 0.0
  %1754 = vmatpush2.msra.mxu0 0.0
  %1755 = vmatprep.subr.mxu0 0.0
  %1756 = vmatpush2.msra.mxu0 0.0
  %1757 = vmatprep.subr.mxu0 0.0
  %1758 = vmatpush2.msra.mxu0 0.0
  %1759 = vmatprep.subr.mxu0 0.0
  %1760 = vmatpush2.msra.mxu0 0.0
  %1761 = vmatprep.subr.mxu0 0.0
  %1762 = vmatpush2.msra.mxu0 0.0
  %1763 = vmatprep.subr.mxu0 0.0
  %1764 = vmatpush2.msra.mxu0 0.0
  %1765 = vmatprep.subr.mxu0 0.0
  %1766 = vmatpush2.msra.mxu0 0.0
  %1767 = vmatprep.mubr.f32.mxu0 0.0
  %1768 = vmatmul.mubr.f32.gmra.mxu0 %v1701
  %v1769 = vpop.f32.mrf.mxu0
  %v1770 = vadd.f32 0.0, %v1769
  %v1771 = vpop.f32.mrf.mxu0
  %1772 = vdwg.mxu0
  %v1773 = vadd.f32 %v1167, %v1770
  %v1774 = vxor.u32 %v1773, 2147483648
  %v1775 = vmul.f32 %v1774, 1.442695
  %v1776 = vpow.pop %v1775
  %v1777 = vadd.f32 %v1776, 1.0
  %v1778 = vrcp.pop %v1777
  %v1779 = vmul.f32 1.0, %v1778
  %v1780 = vadd.f32 %v1770, %v1268
  %1782 = vrot.lane.b32.xlu0 %v1780, 64
  %v1783 = vpop.permute.xlu0 %1782
  %v1785 = vmul.f32 %v1779, %v1783
  %1787 = vrot.lane.b32.xlu0 %v1785, 64
  %v1788 = vpop.permute.xlu0 %1787
  %v1790 = vadd.f32 %v1167, %v1788
  %v1791 = vtanh.pop %v1790
  %v1792 = vsub.f32 1.0, %v1779
  %1794 = vrot.lane.b32.xlu0 %v1791, 96
  %v1795 = vpop.permute.xlu0 %1794
  %v1797 = vmul.f32 %v1792, %v1795
  %v1798 = vmul.f32 %v1779, %v1697
  %v1799 = vadd.f32 %v1797, %v1798
  %1801 = vrot.lane.b32.xlu0 %v1799, 96
  %v1802 = vpop.permute.xlu0 %1801
  %v1803 = vsel %vm195, %v1802, 0
  %1805 = vmatprep.subr.mxu0 0.0
  %1806 = vmatpush1.msra.mxu0 0.0
  %1807 = vmatprep.subr.mxu0 0.0
  %1808 = vmatpush1.msra.mxu0 0.0
  %1809 = vmatprep.subr.mxu0 0.0
  %1810 = vmatpush1.msra.mxu0 0.0
  %1811 = vmatprep.subr.mxu0 0.0
  %1812 = vmatpush1.msra.mxu0 0.0
  %1813 = vmatprep.subr.mxu0 0.0
  %1814 = vmatpush1.msra.mxu0 0.0
  %1815 = vmatprep.subr.mxu0 0.0
  %1816 = vmatpush1.msra.mxu0 0.0
  %1817 = vmatprep.subr.mxu0 0.0
  %1818 = vmatpush1.msra.mxu0 0.0
  %1819 = vmatprep.subr.mxu0 0.0
  %1820 = vmatpush1.msra.mxu0 0.0
  %1821 = vmatprep.subr.mxu0 0.0
  %1822 = vmatpush1.msra.mxu0 0.0
  %1823 = vmatprep.subr.mxu0 0.0
  %1824 = vmatpush1.msra.mxu0 0.0
  %1825 = vmatprep.subr.mxu0 0.0
  %1826 = vmatpush1.msra.mxu0 0.0
  %1827 = vmatprep.subr.mxu0 0.0
  %1828 = vmatpush1.msra.mxu0 0.0
  %1829 = vmatprep.subr.mxu0 0.0
  %1830 = vmatpush1.msra.mxu0 %v1183
  %1831 = vmatprep.subr.mxu0 0.0
  %1832 = vmatpush1.msra.mxu0 %v1182
  %1833 = vmatprep.subr.mxu0 0.0
  %1834 = vmatpush1.msra.mxu0 %v1181
  %1835 = vmatprep.subr.mxu0 0.0
  %1836 = vmatpush1.msra.mxu0 %v1180
  %1837 = vmatprep.subr.mxu0 0.0
  %1838 = vmatpush2.msra.mxu0 0.0
  %1839 = vmatprep.subr.mxu0 0.0
  %1840 = vmatpush2.msra.mxu0 0.0
  %1841 = vmatprep.subr.mxu0 0.0
  %1842 = vmatpush2.msra.mxu0 0.0
  %1843 = vmatprep.subr.mxu0 0.0
  %1844 = vmatpush2.msra.mxu0 0.0
  %1845 = vmatprep.subr.mxu0 0.0
  %1846 = vmatpush2.msra.mxu0 0.0
  %1847 = vmatprep.subr.mxu0 0.0
  %1848 = vmatpush2.msra.mxu0 0.0
  %1849 = vmatprep.subr.mxu0 0.0
  %1850 = vmatpush2.msra.mxu0 0.0
  %1851 = vmatprep.subr.mxu0 0.0
  %1852 = vmatpush2.msra.mxu0 0.0
  %1853 = vmatprep.subr.mxu0 0.0
  %1854 = vmatpush2.msra.mxu0 0.0
  %1855 = vmatprep.subr.mxu0 0.0
  %1856 = vmatpush2.msra.mxu0 0.0
  %1857 = vmatprep.subr.mxu0 0.0
  %1858 = vmatpush2.msra.mxu0 0.0
  %1859 = vmatprep.subr.mxu0 0.0
  %1860 = vmatpush2.msra.mxu0 0.0
  %1861 = vmatprep.subr.mxu0 0.0
  %1862 = vmatpush2.msra.mxu0 0.0
  %1863 = vmatprep.subr.mxu0 0.0
  %1864 = vmatpush2.msra.mxu0 0.0
  %1865 = vmatprep.subr.mxu0 0.0
  %1866 = vmatpush2.msra.mxu0 0.0
  %1867 = vmatprep.subr.mxu0 0.0
  %1868 = vmatpush2.msra.mxu0 0.0
  %1869 = vmatprep.mubr.f32.mxu0 0.0
  %1870 = vmatmul.mubr.f32.gmra.mxu0 %v1803
  %v1871 = vpop.f32.mrf.mxu0
  %v1872 = vadd.f32 0.0, %v1871
  %v1873 = vpop.f32.mrf.mxu0
  %1874 = vdwg.mxu0
  %v1875 = vadd.f32 %v1172, %v1872
  %v1876 = vxor.u32 %v1875, 2147483648
  %v1877 = vmul.f32 %v1876, 1.442695
  %v1878 = vpow.pop %v1877
  %v1879 = vadd.f32 %v1878, 1.0
  %v1880 = vrcp.pop %v1879
  %v1881 = vmul.f32 1.0, %v1880
  %v1882 = vadd.f32 %v1872, %v1268
  %1884 = vrot.lane.b32.xlu0 %v1882, 64
  %v1885 = vpop.permute.xlu0 %1884
  %v1887 = vmul.f32 %v1881, %v1885
  %1889 = vrot.lane.b32.xlu0 %v1887, 64
  %v1890 = vpop.permute.xlu0 %1889
  %v1892 = vadd.f32 %v1172, %v1890
  %v1893 = vtanh.pop %v1892
  %v1894 = vsub.f32 1.0, %v1881
  %1896 = vrot.lane.b32.xlu0 %v1893, 96
  %v1897 = vpop.permute.xlu0 %1896
  %v1899 = vmul.f32 %v1894, %v1897
  %v1900 = vmul.f32 %v1881, %v1799
  %v1901 = vadd.f32 %v1899, %v1900
  %1903 = vrot.lane.b32.xlu0 %v1901, 96
  %v1904 = vpop.permute.xlu0 %1903
  %v1905 = vsel %vm195, %v1904, 0
  %1907 = vmatprep.subr.mxu0 0.0
  %1908 = vmatpush1.msra.mxu0 0.0
  %1909 = vmatprep.subr.mxu0 0.0
  %1910 = vmatpush1.msra.mxu0 0.0
  %1911 = vmatprep.subr.mxu0 0.0
  %1912 = vmatpush1.msra.mxu0 0.0
  %1913 = vmatprep.subr.mxu0 0.0
  %1914 = vmatpush1.msra.mxu0 0.0
  %1915 = vmatprep.subr.mxu0 0.0
  %1916 = vmatpush1.msra.mxu0 0.0
  %1917 = vmatprep.subr.mxu0 0.0
  %1918 = vmatpush1.msra.mxu0 0.0
  %1919 = vmatprep.subr.mxu0 0.0
  %1920 = vmatpush1.msra.mxu0 0.0
  %1921 = vmatprep.subr.mxu0 0.0
  %1922 = vmatpush1.msra.mxu0 0.0
  %1923 = vmatprep.subr.mxu0 0.0
  %1924 = vmatpush1.msra.mxu0 0.0
  %1925 = vmatprep.subr.mxu0 0.0
  %1926 = vmatpush1.msra.mxu0 0.0
  %1927 = vmatprep.subr.mxu0 0.0
  %1928 = vmatpush1.msra.mxu0 0.0
  %1929 = vmatprep.subr.mxu0 0.0
  %1930 = vmatpush1.msra.mxu0 0.0
  %1931 = vmatprep.subr.mxu0 0.0
  %1932 = vmatpush1.msra.mxu0 %v1183
  %1933 = vmatprep.subr.mxu0 0.0
  %1934 = vmatpush1.msra.mxu0 %v1182
  %1935 = vmatprep.subr.mxu0 0.0
  %1936 = vmatpush1.msra.mxu0 %v1181
  %1937 = vmatprep.subr.mxu0 0.0
  %1938 = vmatpush1.msra.mxu0 %v1180
  %1939 = vmatprep.subr.mxu0 0.0
  %1940 = vmatpush2.msra.mxu0 0.0
  %1941 = vmatprep.subr.mxu0 0.0
  %1942 = vmatpush2.msra.mxu0 0.0
  %1943 = vmatprep.subr.mxu0 0.0
  %1944 = vmatpush2.msra.mxu0 0.0
  %1945 = vmatprep.subr.mxu0 0.0
  %1946 = vmatpush2.msra.mxu0 0.0
  %1947 = vmatprep.subr.mxu0 0.0
  %1948 = vmatpush2.msra.mxu0 0.0
  %1949 = vmatprep.subr.mxu0 0.0
  %1950 = vmatpush2.msra.mxu0 0.0
  %1951 = vmatprep.subr.mxu0 0.0
  %1952 = vmatpush2.msra.mxu0 0.0
  %1953 = vmatprep.subr.mxu0 0.0
  %1954 = vmatpush2.msra.mxu0 0.0
  %1955 = vmatprep.subr.mxu0 0.0
  %1956 = vmatpush2.msra.mxu0 0.0
  %1957 = vmatprep.subr.mxu0 0.0
  %1958 = vmatpush2.msra.mxu0 0.0
  %1959 = vmatprep.subr.mxu0 0.0
  %1960 = vmatpush2.msra.mxu0 0.0
  %1961 = vmatprep.subr.mxu0 0.0
  %1962 = vmatpush2.msra.mxu0 0.0
  %1963 = vmatprep.subr.mxu0 0.0
  %1964 = vmatpush2.msra.mxu0 0.0
  %1965 = vmatprep.subr.mxu0 0.0
  %1966 = vmatpush2.msra.mxu0 0.0
  %1967 = vmatprep.subr.mxu0 0.0
  %1968 = vmatpush2.msra.mxu0 0.0
  %1969 = vmatprep.subr.mxu0 0.0
  %1970 = vmatpush2.msra.mxu0 0.0
  %1971 = vmatprep.mubr.f32.mxu0 0.0
  %1972 = vmatmul.mubr.f32.gmra.mxu0 %v1905
  %v1973 = vpop.f32.mrf.mxu0
  %v1974 = vadd.f32 0.0, %v1973
  %v1975 = vpop.f32.mrf.mxu0
  %1976 = vdwg.mxu0
  %v1977 = vadd.f32 %v1177, %v1974
  %v1978 = vxor.u32 %v1977, 2147483648
  %v1979 = vmul.f32 %v1978, 1.442695
  %v1980 = vpow.pop %v1979
  %v1981 = vadd.f32 %v1980, 1.0
  %v1982 = vrcp.pop %v1981
  %v1983 = vmul.f32 1.0, %v1982
  %v1984 = vadd.f32 %v1974, %v1268
  %1986 = vrot.lane.b32.xlu0 %v1984, 64
  %v1987 = vpop.permute.xlu0 %1986
  %v1989 = vmul.f32 %v1983, %v1987
  %1991 = vrot.lane.b32.xlu0 %v1989, 64
  %v1992 = vpop.permute.xlu0 %1991
  %v1994 = vadd.f32 %v1177, %v1992
  %v1995 = vtanh.pop %v1994
  %v1996 = vsub.f32 1.0, %v1983
  %1998 = vrot.lane.b32.xlu0 %v1995, 96
  %v1999 = vpop.permute.xlu0 %1998
  %v2001 = vmul.f32 %v1996, %v1999
  %v2002 = vmul.f32 %v1983, %v1901
  %v2003 = vadd.f32 %v2001, %v2002
  %v2004 = vld [vmem:[%s9] sm:$0xff]
  %v2005 = vld [vmem:[%s9 + $0x8] sm:$0xff]
  %v2006 = vld [vmem:[%s9 + $0x10] sm:$0xff]
  %v2007 = vld [vmem:[%s9 + $0x18] sm:$0xff]
  %v2008 = vld [vmem:[%s10] sm:$0x1]
  %v2010 = vlaneseq
  %v2011 = vshrl.u32 %v2010, 7
  %v2012 = vsub.s32 0, %v2011
  %v2013 = vrot.slane %v2008, %v2012
  %2016 = vrot.lane.b32.xlu0 %v2003, 96
  %v2017 = vpop.permute.xlu0 %2016
  %v2018 = vsel %vm195, %v2017, 0
  %2020 = vmatprep.subr.mxu0 0.0
  %2021 = vmatpush1.msra.mxu0 0.0
  %2022 = vmatprep.subr.mxu0 0.0
  %2023 = vmatpush1.msra.mxu0 0.0
  %2024 = vmatprep.subr.mxu0 0.0
  %2025 = vmatpush1.msra.mxu0 0.0
  %2026 = vmatprep.subr.mxu0 0.0
  %2027 = vmatpush1.msra.mxu0 0.0
  %2028 = vmatprep.subr.mxu0 0.0
  %2029 = vmatpush1.msra.mxu0 0.0
  %2030 = vmatprep.subr.mxu0 0.0
  %2031 = vmatpush1.msra.mxu0 0.0
  %2032 = vmatprep.subr.mxu0 0.0
  %2033 = vmatpush1.msra.mxu0 0.0
  %2034 = vmatprep.subr.mxu0 0.0
  %2035 = vmatpush1.msra.mxu0 0.0
  %2036 = vmatprep.subr.mxu0 0.0
  %2037 = vmatpush1.msra.mxu0 0.0
  %2038 = vmatprep.subr.mxu0 0.0
  %2039 = vmatpush1.msra.mxu0 0.0
  %2040 = vmatprep.subr.mxu0 0.0
  %2041 = vmatpush1.msra.mxu0 0.0
  %2042 = vmatprep.subr.mxu0 0.0
  %2043 = vmatpush1.msra.mxu0 0.0
  %2044 = vmatprep.subr.mxu0 0.0
  %2045 = vmatpush1.msra.mxu0 %v2007
  %2046 = vmatprep.subr.mxu0 0.0
  %2047 = vmatpush1.msra.mxu0 %v2006
  %2048 = vmatprep.subr.mxu0 0.0
  %2049 = vmatpush1.msra.mxu0 %v2005
  %2050 = vmatprep.subr.mxu0 0.0
  %2051 = vmatpush1.msra.mxu0 %v2004
  %2052 = vmatprep.subr.mxu0 0.0
  %2053 = vmatpush2.msra.mxu0 0.0
  %2054 = vmatprep.subr.mxu0 0.0
  %2055 = vmatpush2.msra.mxu0 0.0
  %2056 = vmatprep.subr.mxu0 0.0
  %2057 = vmatpush2.msra.mxu0 0.0
  %2058 = vmatprep.subr.mxu0 0.0
  %2059 = vmatpush2.msra.mxu0 0.0
  %2060 = vmatprep.subr.mxu0 0.0
  %2061 = vmatpush2.msra.mxu0 0.0
  %2062 = vmatprep.subr.mxu0 0.0
  %2063 = vmatpush2.msra.mxu0 0.0
  %2064 = vmatprep.subr.mxu0 0.0
  %2065 = vmatpush2.msra.mxu0 0.0
  %2066 = vmatprep.subr.mxu0 0.0
  %2067 = vmatpush2.msra.mxu0 0.0
  %2068 = vmatprep.subr.mxu0 0.0
  %2069 = vmatpush2.msra.mxu0 0.0
  %2070 = vmatprep.subr.mxu0 0.0
  %2071 = vmatpush2.msra.mxu0 0.0
  %2072 = vmatprep.subr.mxu0 0.0
  %2073 = vmatpush2.msra.mxu0 0.0
  %2074 = vmatprep.subr.mxu0 0.0
  %2075 = vmatpush2.msra.mxu0 0.0
  %2076 = vmatprep.subr.mxu0 0.0
  %2077 = vmatpush2.msra.mxu0 0.0
  %2078 = vmatprep.subr.mxu0 0.0
  %2079 = vmatpush2.msra.mxu0 0.0
  %2080 = vmatprep.subr.mxu0 0.0
  %2081 = vmatpush2.msra.mxu0 0.0
  %2082 = vmatprep.subr.mxu0 0.0
  %2083 = vmatpush2.msra.mxu0 0.0
  %2084 = vmatprep.mubr.f32.mxu0 0.0
  %2085 = vmatmul.mubr.f32.gmra.mxu0 %v2018
  %v2086 = vpop.f32.mrf.mxu0
  %v2087 = vadd.f32 %v2013, %v2086
  %v2088 = vpop.f32.mrf.mxu0
  %2089 = vdwg.mxu0
  %vm2090 = vcmask 80896
  %2091 = vst.msk [vmem:[%s11] sm:$0xff] %vm2090, %v2087
  // Predicated region
  $region46: #{gru_model.1} parent=0 // pred_check
    _
  $region47: #{gru_model.1} parent=0 // pred_check_branch
    %2093 = sbr.rel (0) target = $region49
  $region48: #{gru_model.1} parent=0 // pred_region
    _
  $region49: #{gru_model.1} parent=0 // pred_fallthru
    _
  // Predicated region
  $region50: #{gru_model.1} parent=0 // pred_check
    _
  $region51: #{gru_model.1} parent=0 // pred_check_branch
    %2095 = sbr.rel (0) target = $region53
  $region52: #{gru_model.1} parent=0 // pred_region
    _
  $region53: #{gru_model.1} parent=0 // pred_fallthru
    _

</llo_original>
